<compile_context>
chip_gen: v6e
topology: v6e:2x2x1
jax: 0.10.0
libtpu: 0.0.40
codegen_flags: <defaults>
</compile_context>

<pallas_src>
import functools

import jax
import jax.numpy as jnp
from jax import lax
from jax.experimental import pallas as pl
from jax.experimental.pallas import tpu as pltpu


def _round_up(v, m):
    return (v + m - 1) // m * m


def _pick_block_n(n):
    # Keep grid_n >= 2 whenever possible so both v7x TensorCores are fed and
    # the input/output DMA pipeline has >= 2 steps to overlap.
    for cand in (8, 4, 2, 1):
        if cand <= n and n % cand == 0 and (n // cand) >= 2:
            return cand
    return 1


def _fuse_weights(dw3, pw3, dw5, pw5, dw7, pw7):
    """Fold depthwise weights into the pointwise 1x1 weights.

    Returns W_all of shape (C, 49*C) with tap order t = (di+3)*7 + (dj+3),
    column (t*C + c) = sum_k 1[(di,dj) in supp_k] * pw_k[o,c] * dw_k[c,di+p,dj+p].
    """
    C = pw3.shape[0]
    dws = {3: dw3.reshape(C, 3, 3).astype(jnp.float32),
           5: dw5.reshape(C, 5, 5).astype(jnp.float32),
           7: dw7.reshape(C, 7, 7).astype(jnp.float32)}
    pws = {3: pw3.reshape(C, C).astype(jnp.float32),
           5: pw5.reshape(C, C).astype(jnp.float32),
           7: pw7.reshape(C, C).astype(jnp.float32)}
    blocks = []
    for di in range(-3, 4):
        for dj in range(-3, 4):
            blk = jnp.zeros((C, C), jnp.float32)
            for k in (3, 5, 7):
                p = k // 2
                if abs(di) <= p and abs(dj) <= p:
                    blk = blk + pws[k] * dws[k][:, di + p, dj + p][None, :]
            blocks.append(blk)
    return jnp.concatenate(blocks, axis=1)          # (C, 49*C)


def _msconv_kernel(x_ref, w_ref, o_ref, xs_ref, *, bn, C, H, Wp, margin,
                   matmul_dtype):
    # x_ref:  (bn, C, Lp)    row-padded, flattened image (zero halo baked in)
    # w_ref:  (C, 49*C)      fused depthwise+pointwise weights (all 3 scales)
    # o_ref:  (bn, C, L)     output in padded-column layout, L = H*Wp
    # xs_ref: (49*C, bn*L)   im2col operand (VMEM scratch)
    L = H * Wp

    # im2col: 49 shifted row-padded views stacked along the sublane axis,
    # batch riding the lane axis.  Every slice is static and lane-contiguous;
    # no masks needed because column shifts land in the width padding.
    t = 0
    for di in range(-3, 4):
        for dj in range(-3, 4):
            start = margin + (3 + di) * Wp + dj
            for b in range(bn):
                xs_ref[t * C:(t + 1) * C, b * L:(b + 1) * L] = (
                    x_ref[b, :, start:start + L].astype(matmul_dtype))
            t += 1

    # One fused MXU matmul: depthwise + pointwise, all three scales, all bn
    # images.  (C, 49C) @ (49C, bn*L) -> (C, bn*L), f32 accumulate.
    y = jnp.dot(w_ref[...], xs_ref[...], preferred_element_type=jnp.float32)

    for b in range(bn):
        o_ref[b] = y[:, b * L:(b + 1) * L].astype(o_ref.dtype)


def multi_scale_conv(x, dw3, pw3, dw5, pw5, dw7, pw7, *, block_n=None,
                     matmul_dtype=jnp.float32):
    """x: (N, C, H, W); dwK: (C, 1, K, K); pwK: (C, C, 1, 1). Returns (N, C, H, W)."""
    N, C, H, W = x.shape
    Hp, Wp = H + 6, W + 8       # 3/3 height halo, 4/4 width halo (lane padding)
    L = H * Wp                  # per-image output lanes (padded-column layout)
    margin = 8                  # left slack so the (-3,-3) tap start is >= 0
    Lp = _round_up(margin + Hp * Wp + 8, 128)   # per-image input lanes

    bn = _pick_block_n(N) if block_n is None else block_n
    assert N % bn == 0
    grid_n = N // bn

    # ---- wrapper-side layout plumbing (zero halo + flatten rows to lanes) ----
    xpad = jnp.pad(x, ((0, 0), (0, 0), (3, 3), (4, 4)))      # (N, C, Hp, Wp)
    xf = xpad.reshape(N, C, Hp * Wp)
    xf = jnp.pad(xf, ((0, 0), (0, 0), (margin, Lp - margin - Hp * Wp)))

    w_all = _fuse_weights(dw3, pw3, dw5, pw5, dw7, pw7).astype(matmul_dtype)

    kernel = functools.partial(_msconv_kernel, bn=bn, C=C, H=H, Wp=Wp,
                               margin=margin, matmul_dtype=matmul_dtype)

    grid_spec = pltpu.PrefetchScalarGridSpec(
        num_scalar_prefetch=0,
        grid=(grid_n,),
        in_specs=[
            pl.BlockSpec((bn, C, Lp), lambda n: (n, 0, 0)),
            pl.BlockSpec((C, 49 * C), lambda n: (0, 0)),
        ],
        out_specs=pl.BlockSpec((bn, C, L), lambda n: (n, 0, 0)),
        scratch_shapes=[pltpu.VMEM((49 * C, bn * L), matmul_dtype)],
    )

    # ---- VMEM budget (review: re-budget for v7x's 64 MiB physical VMEM) ----
    itm = jnp.dtype(x.dtype).itemsize
    mitm = jnp.dtype(matmul_dtype).itemsize
    per_step = (2 * bn * C * Lp * itm           # double-buffered input block
                + 2 * bn * C * L * itm          # double-buffered output block
                + 2 * C * 49 * C * mitm         # double-buffered fused weights
                + 49 * C * bn * L * mitm)       # im2col scratch
    assert per_step < 48 * 1024 * 1024, (
        "per-step VMEM footprint too large: tile H (with a 3-row halo) or "
        "reduce block_n for this shape")
    vmem_limit = min(max(4 * per_step, 16 * 1024 * 1024), 48 * 1024 * 1024)

    out = pl.pallas_call(
        kernel,
        out_shape=jax.ShapeDtypeStruct((N, C, L), x.dtype),
        grid_spec=grid_spec,
        compiler_params=pltpu.CompilerParams(
            dimension_semantics=("parallel",),
            vmem_limit_bytes=vmem_limit),
    )(xf, w_all)

    # Compact the width padding columns out of each row (layout plumbing only).
    return out.reshape(N, C, H, Wp)[:, :, :, 4:4 + W]


# ------------------------- reference (pure JAX) -----------------------------

def _dsc(x, dw, pw, k):
    p = k // 2
    y = lax.conv_general_dilated(
        x, dw, window_strides=(1, 1), padding=((p, p), (p, p)),
        dimension_numbers=("NCHW", "OIHW", "NCHW"),
        feature_group_count=x.shape[1])
    y = lax.conv_general_dilated(
        y, pw, window_strides=(1, 1), padding=((0, 0), (0, 0)),
        dimension_numbers=("NCHW", "OIHW", "NCHW"))
    return y


def _reference(x, dw3, pw3, dw5, pw5, dw7, pw7):
    return _dsc(x, dw3, pw3, 3) + _dsc(x, dw5, pw5, 5) + _dsc(x, dw7, pw7, 7)


if __name__ == "__main__":
    key = jax.random.PRNGKey(0)
    ks = jax.random.split(key, 7)

    N, C, H, W = 2, 4, 16, 16
    x = jax.random.normal(ks[0], (N, C, H, W), dtype=jnp.float32)

    # PyTorch Conv2d default init: U(-1/sqrt(fan_in), 1/sqrt(fan_in)).
    def _uinit(k, shape, fan_in):
        bound = 1.0 / (fan_in ** 0.5)
        return jax.random.uniform(k, shape, jnp.float32, -bound, bound)

    dw3 = _uinit(ks[1], (C, 1, 3, 3), 1 * 3 * 3)
    dw5 = _uinit(ks[2], (C, 1, 5, 5), 1 * 5 * 5)
    dw7 = _uinit(ks[3], (C, 1, 7, 7), 1 * 7 * 7)
    pw3 = _uinit(ks[4], (C, C, 1, 1), C)
    pw5 = _uinit(ks[5], (C, C, 1, 1), C)
    pw7 = _uinit(ks[6], (C, C, 1, 1), C)

    out = multi_scale_conv(x, dw3, pw3, dw5, pw5, dw7, pw7)
    out = jax.block_until_ready(out)

    ref = _reference(x, dw3, pw3, dw5, pw5, dw7, pw7)
    assert out.shape == (N, C, H, W)
    err = float(jnp.max(jnp.abs(out - ref)))
    assert err < 5e-4, err

    print("KERNEL_OK")
</pallas_src>

<mosaic_0001>
module attributes {stable_mosaic.version = 11 : i64} {
  func.func @_msconv_kernel(%arg0: i32, %arg1: memref<1x4x640xf32, #tpu.memory_space<vmem>>, %arg2: memref<4x196xf32, #tpu.memory_space<vmem>>, %arg3: memref<1x4x384xf32, #tpu.memory_space<vmem>>, %arg4: memref<196x384xf32, #tpu.memory_space<vmem>>) attributes {dimension_semantics = [#tpu.dimension_semantics<parallel>], iteration_bounds = array<i64: 2>, scalar_prefetch = 0 : i64, scratch_operands = 1 : i64, tpu.core_type = #tpu.core_type<tc>, window_params = [{transform_indices = @transform_0, window_bounds = array<i64: 1, 4, 640>}, {pipeline_mode = #tpu.pipeline_mode<synchronous>, transform_indices = @transform_1, window_bounds = array<i64: 4, 196>}, {transform_indices = @transform_2, window_bounds = array<i64: 1, 4, 384>}]} {
    %c0 = arith.constant 0 : index
    %c0_0 = arith.constant 0 : index
    %c5 = arith.constant 5 : index
    %0 = vector.load %arg1[%c0, %c0_0, %c5] : memref<1x4x640xf32, #tpu.memory_space<vmem>>, vector<1x4x384xf32>
    %1 = vector.shape_cast %0 : vector<1x4x384xf32> to vector<4x384xf32>
    %c0_1 = arith.constant 0 : index
    %c0_2 = arith.constant 0 : index
    %2 = vector.load %arg4[%c0_1, %c0_2] : memref<196x384xf32, #tpu.memory_space<vmem>>, vector<4x384xf32>
    tpu.vector_store %arg4[%c0_1, %c0_2], %1 {strides = array<i32>} : memref<196x384xf32, #tpu.memory_space<vmem>>, vector<4x384xf32>,
    %c0_3 = arith.constant 0 : index
    %c0_4 = arith.constant 0 : index
    %c6 = arith.constant 6 : index
    %3 = vector.load %arg1[%c0_3, %c0_4, %c6] : memref<1x4x640xf32, #tpu.memory_space<vmem>>, vector<1x4x384xf32>
    %4 = vector.shape_cast %3 : vector<1x4x384xf32> to vector<4x384xf32>
    %c4 = arith.constant 4 : index
    %c0_5 = arith.constant 0 : index
    %5 = vector.load %arg4[%c4, %c0_5] : memref<196x384xf32, #tpu.memory_space<vmem>>, vector<4x384xf32>
    tpu.vector_store %arg4[%c4, %c0_5], %4 {strides = array<i32>} : memref<196x384xf32, #tpu.memory_space<vmem>>, vector<4x384xf32>,
    %c0_6 = arith.constant 0 : index
    %c0_7 = arith.constant 0 : index
    %c7 = arith.constant 7 : index
    %6 = vector.load %arg1[%c0_6, %c0_7, %c7] : memref<1x4x640xf32, #tpu.memory_space<vmem>>, vector<1x4x384xf32>
    %7 = vector.shape_cast %6 : vector<1x4x384xf32> to vector<4x384xf32>
    %c8 = arith.constant 8 : index
    %c0_8 = arith.constant 0 : index
    %8 = vector.load %arg4[%c8, %c0_8] : memref<196x384xf32, #tpu.memory_space<vmem>>, vector<4x384xf32>
    tpu.vector_store %arg4[%c8, %c0_8], %7 {strides = array<i32>} : memref<196x384xf32, #tpu.memory_space<vmem>>, vector<4x384xf32>,
    %c0_9 = arith.constant 0 : index
    %c0_10 = arith.constant 0 : index
    %c8_11 = arith.constant 8 : index
    %9 = vector.load %arg1[%c0_9, %c0_10, %c8_11] : memref<1x4x640xf32, #tpu.memory_space<vmem>>, vector<1x4x384xf32>
    %10 = vector.shape_cast %9 : vector<1x4x384xf32> to vector<4x384xf32>
    %c12 = arith.constant 12 : index
    %c0_12 = arith.constant 0 : index
    %11 = vector.load %arg4[%c12, %c0_12] : memref<196x384xf32, #tpu.memory_space<vmem>>, vector<4x384xf32>
    tpu.vector_store %arg4[%c12, %c0_12], %10 {strides = array<i32>} : memref<196x384xf32, #tpu.memory_space<vmem>>, vector<4x384xf32>,
    %c0_13 = arith.constant 0 : index
    %c0_14 = arith.constant 0 : index
    %c9 = arith.constant 9 : index
    %12 = vector.load %arg1[%c0_13, %c0_14, %c9] : memref<1x4x640xf32, #tpu.memory_space<vmem>>, vector<1x4x384xf32>
    %13 = vector.shape_cast %12 : vector<1x4x384xf32> to vector<4x384xf32>
    %c16 = arith.constant 16 : index
    %c0_15 = arith.constant 0 : index
    %14 = vector.load %arg4[%c16, %c0_15] : memref<196x384xf32, #tpu.memory_space<vmem>>, vector<4x384xf32>
    tpu.vector_store %arg4[%c16, %c0_15], %13 {strides = array<i32>} : memref<196x384xf32, #tpu.memory_space<vmem>>, vector<4x384xf32>,
    %c0_16 = arith.constant 0 : index
    %c0_17 = arith.constant 0 : index
    %c10 = arith.constant 10 : index
    %15 = vector.load %arg1[%c0_16, %c0_17, %c10] : memref<1x4x640xf32, #tpu.memory_space<vmem>>, vector<1x4x384xf32>
    %16 = vector.shape_cast %15 : vector<1x4x384xf32> to vector<4x384xf32>
    %c20 = arith.constant 20 : index
    %c0_18 = arith.constant 0 : index
    %17 = vector.load %arg4[%c20, %c0_18] : memref<196x384xf32, #tpu.memory_space<vmem>>, vector<4x384xf32>
    tpu.vector_store %arg4[%c20, %c0_18], %16 {strides = array<i32>} : memref<196x384xf32, #tpu.memory_space<vmem>>, vector<4x384xf32>,
    %c0_19 = arith.constant 0 : index
    %c0_20 = arith.constant 0 : index
    %c11 = arith.constant 11 : index
    %18 = vector.load %arg1[%c0_19, %c0_20, %c11] : memref<1x4x640xf32, #tpu.memory_space<vmem>>, vector<1x4x384xf32>
    %19 = vector.shape_cast %18 : vector<1x4x384xf32> to vector<4x384xf32>
    %c24 = arith.constant 24 : index
    %c0_21 = arith.constant 0 : index
    %20 = vector.load %arg4[%c24, %c0_21] : memref<196x384xf32, #tpu.memory_space<vmem>>, vector<4x384xf32>
    tpu.vector_store %arg4[%c24, %c0_21], %19 {strides = array<i32>} : memref<196x384xf32, #tpu.memory_space<vmem>>, vector<4x384xf32>,
    %c0_22 = arith.constant 0 : index
    %c0_23 = arith.constant 0 : index
    %c29 = arith.constant 29 : index
    %21 = vector.load %arg1[%c0_22, %c0_23, %c29] : memref<1x4x640xf32, #tpu.memory_space<vmem>>, vector<1x4x384xf32>
    %22 = vector.shape_cast %21 : vector<1x4x384xf32> to vector<4x384xf32>
    %c28 = arith.constant 28 : index
    %c0_24 = arith.constant 0 : index
    %23 = vector.load %arg4[%c28, %c0_24] : memref<196x384xf32, #tpu.memory_space<vmem>>, vector<4x384xf32>
    tpu.vector_store %arg4[%c28, %c0_24], %22 {strides = array<i32>} : memref<196x384xf32, #tpu.memory_space<vmem>>, vector<4x384xf32>,
    %c0_25 = arith.constant 0 : index
    %c0_26 = arith.constant 0 : index
    %c30 = arith.constant 30 : index
    %24 = vector.load %arg1[%c0_25, %c0_26, %c30] : memref<1x4x640xf32, #tpu.memory_space<vmem>>, vector<1x4x384xf32>
    %25 = vector.shape_cast %24 : vector<1x4x384xf32> to vector<4x384xf32>
    %c32 = arith.constant 32 : index
    %c0_27 = arith.constant 0 : index
    %26 = vector.load %arg4[%c32, %c0_27] : memref<196x384xf32, #tpu.memory_space<vmem>>, vector<4x384xf32>
    tpu.vector_store %arg4[%c32, %c0_27], %25 {strides = array<i32>} : memref<196x384xf32, #tpu.memory_space<vmem>>, vector<4x384xf32>,
    %c0_28 = arith.constant 0 : index
    %c0_29 = arith.constant 0 : index
    %c31 = arith.constant 31 : index
    %27 = vector.load %arg1[%c0_28, %c0_29, %c31] : memref<1x4x640xf32, #tpu.memory_space<vmem>>, vector<1x4x384xf32>
    %28 = vector.shape_cast %27 : vector<1x4x384xf32> to vector<4x384xf32>
    %c36 = arith.constant 36 : index
    %c0_30 = arith.constant 0 : index
    %29 = vector.load %arg4[%c36, %c0_30] : memref<196x384xf32, #tpu.memory_space<vmem>>, vector<4x384xf32>
    tpu.vector_store %arg4[%c36, %c0_30], %28 {strides = array<i32>} : memref<196x384xf32, #tpu.memory_space<vmem>>, vector<4x384xf32>,
    %c0_31 = arith.constant 0 : index
    %c0_32 = arith.constant 0 : index
    %c32_33 = arith.constant 32 : index
    %30 = vector.load %arg1[%c0_31, %c0_32, %c32_33] : memref<1x4x640xf32, #tpu.memory_space<vmem>>, vector<1x4x384xf32>
    %31 = vector.shape_cast %30 : vector<1x4x384xf32> to vector<4x384xf32>
    %c40 = arith.constant 40 : index
    %c0_34 = arith.constant 0 : index
    %32 = vector.load %arg4[%c40, %c0_34] : memref<196x384xf32, #tpu.memory_space<vmem>>, vector<4x384xf32>
    tpu.vector_store %arg4[%c40, %c0_34], %31 {strides = array<i32>} : memref<196x384xf32, #tpu.memory_space<vmem>>, vector<4x384xf32>,
    %c0_35 = arith.constant 0 : index
    %c0_36 = arith.constant 0 : index
    %c33 = arith.constant 33 : index
    %33 = vector.load %arg1[%c0_35, %c0_36, %c33] : memref<1x4x640xf32, #tpu.memory_space<vmem>>, vector<1x4x384xf32>
    %34 = vector.shape_cast %33 : vector<1x4x384xf32> to vector<4x384xf32>
    %c44 = arith.constant 44 : index
    %c0_37 = arith.constant 0 : index
    %35 = vector.load %arg4[%c44, %c0_37] : memref<196x384xf32, #tpu.memory_space<vmem>>, vector<4x384xf32>
    tpu.vector_store %arg4[%c44, %c0_37], %34 {strides = array<i32>} : memref<196x384xf32, #tpu.memory_space<vmem>>, vector<4x384xf32>,
    %c0_38 = arith.constant 0 : index
    %c0_39 = arith.constant 0 : index
    %c34 = arith.constant 34 : index
    %36 = vector.load %arg1[%c0_38, %c0_39, %c34] : memref<1x4x640xf32, #tpu.memory_space<vmem>>, vector<1x4x384xf32>
    %37 = vector.shape_cast %36 : vector<1x4x384xf32> to vector<4x384xf32>
    %c48 = arith.constant 48 : index
    %c0_40 = arith.constant 0 : index
    %38 = vector.load %arg4[%c48, %c0_40] : memref<196x384xf32, #tpu.memory_space<vmem>>, vector<4x384xf32>
    tpu.vector_store %arg4[%c48, %c0_40], %37 {strides = array<i32>} : memref<196x384xf32, #tpu.memory_space<vmem>>, vector<4x384xf32>,
    %c0_41 = arith.constant 0 : index
    %c0_42 = arith.constant 0 : index
    %c35 = arith.constant 35 : index
    %39 = vector.load %arg1[%c0_41, %c0_42, %c35] : memref<1x4x640xf32, #tpu.memory_space<vmem>>, vector<1x4x384xf32>
    %40 = vector.shape_cast %39 : vector<1x4x384xf32> to vector<4x384xf32>
    %c52 = arith.constant 52 : index
    %c0_43 = arith.constant 0 : index
    %41 = vector.load %arg4[%c52, %c0_43] : memref<196x384xf32, #tpu.memory_space<vmem>>, vector<4x384xf32>
    tpu.vector_store %arg4[%c52, %c0_43], %40 {strides = array<i32>} : memref<196x384xf32, #tpu.memory_space<vmem>>, vector<4x384xf32>,
    %c0_44 = arith.constant 0 : index
    %c0_45 = arith.constant 0 : index
    %c53 = arith.constant 53 : index
    %42 = vector.load %arg1[%c0_44, %c0_45, %c53] : memref<1x4x640xf32, #tpu.memory_space<vmem>>, vector<1x4x384xf32>
    %43 = vector.shape_cast %42 : vector<1x4x384xf32> to vector<4x384xf32>
    %c56 = arith.constant 56 : index
    %c0_46 = arith.constant 0 : index
    %44 = vector.load %arg4[%c56, %c0_46] : memref<196x384xf32, #tpu.memory_space<vmem>>, vector<4x384xf32>
    tpu.vector_store %arg4[%c56, %c0_46], %43 {strides = array<i32>} : memref<196x384xf32, #tpu.memory_space<vmem>>, vector<4x384xf32>,
    %c0_47 = arith.constant 0 : index
    %c0_48 = arith.constant 0 : index
    %c54 = arith.constant 54 : index
    %45 = vector.load %arg1[%c0_47, %c0_48, %c54] : memref<1x4x640xf32, #tpu.memory_space<vmem>>, vector<1x4x384xf32>
    %46 = vector.shape_cast %45 : vector<1x4x384xf32> to vector<4x384xf32>
    %c60 = arith.constant 60 : index
    %c0_49 = arith.constant 0 : index
    %47 = vector.load %arg4[%c60, %c0_49] : memref<196x384xf32, #tpu.memory_space<vmem>>, vector<4x384xf32>
    tpu.vector_store %arg4[%c60, %c0_49], %46 {strides = array<i32>} : memref<196x384xf32, #tpu.memory_space<vmem>>, vector<4x384xf32>,
    %c0_50 = arith.constant 0 : index
    %c0_51 = arith.constant 0 : index
    %c55 = arith.constant 55 : index
    %48 = vector.load %arg1[%c0_50, %c0_51, %c55] : memref<1x4x640xf32, #tpu.memory_space<vmem>>, vector<1x4x384xf32>
    %49 = vector.shape_cast %48 : vector<1x4x384xf32> to vector<4x384xf32>
    %c64 = arith.constant 64 : index
    %c0_52 = arith.constant 0 : index
    %50 = vector.load %arg4[%c64, %c0_52] : memref<196x384xf32, #tpu.memory_space<vmem>>, vector<4x384xf32>
    tpu.vector_store %arg4[%c64, %c0_52], %49 {strides = array<i32>} : memref<196x384xf32, #tpu.memory_space<vmem>>, vector<4x384xf32>,
    %c0_53 = arith.constant 0 : index
    %c0_54 = arith.constant 0 : index
    %c56_55 = arith.constant 56 : index
    %51 = vector.load %arg1[%c0_53, %c0_54, %c56_55] : memref<1x4x640xf32, #tpu.memory_space<vmem>>, vector<1x4x384xf32>
    %52 = vector.shape_cast %51 : vector<1x4x384xf32> to vector<4x384xf32>
    %c68 = arith.constant 68 : index
    %c0_56 = arith.constant 0 : index
    %53 = vector.load %arg4[%c68, %c0_56] : memref<196x384xf32, #tpu.memory_space<vmem>>, vector<4x384xf32>
    tpu.vector_store %arg4[%c68, %c0_56], %52 {strides = array<i32>} : memref<196x384xf32, #tpu.memory_space<vmem>>, vector<4x384xf32>,
    %c0_57 = arith.constant 0 : index
    %c0_58 = arith.constant 0 : index
    %c57 = arith.constant 57 : index
    %54 = vector.load %arg1[%c0_57, %c0_58, %c57] : memref<1x4x640xf32, #tpu.memory_space<vmem>>, vector<1x4x384xf32>
    %55 = vector.shape_cast %54 : vector<1x4x384xf32> to vector<4x384xf32>
    %c72 = arith.constant 72 : index
    %c0_59 = arith.constant 0 : index
    %56 = vector.load %arg4[%c72, %c0_59] : memref<196x384xf32, #tpu.memory_space<vmem>>, vector<4x384xf32>
    tpu.vector_store %arg4[%c72, %c0_59], %55 {strides = array<i32>} : memref<196x384xf32, #tpu.memory_space<vmem>>, vector<4x384xf32>,
    %c0_60 = arith.constant 0 : index
    %c0_61 = arith.constant 0 : index
    %c58 = arith.constant 58 : index
    %57 = vector.load %arg1[%c0_60, %c0_61, %c58] : memref<1x4x640xf32, #tpu.memory_space<vmem>>, vector<1x4x384xf32>
    %58 = vector.shape_cast %57 : vector<1x4x384xf32> to vector<4x384xf32>
    %c76 = arith.constant 76 : index
    %c0_62 = arith.constant 0 : index
    %59 = vector.load %arg4[%c76, %c0_62] : memref<196x384xf32, #tpu.memory_space<vmem>>, vector<4x384xf32>
    tpu.vector_store %arg4[%c76, %c0_62], %58 {strides = array<i32>} : memref<196x384xf32, #tpu.memory_space<vmem>>, vector<4x384xf32>,
    %c0_63 = arith.constant 0 : index
    %c0_64 = arith.constant 0 : index
    %c59 = arith.constant 59 : index
    %60 = vector.load %arg1[%c0_63, %c0_64, %c59] : memref<1x4x640xf32, #tpu.memory_space<vmem>>, vector<1x4x384xf32>
    %61 = vector.shape_cast %60 : vector<1x4x384xf32> to vector<4x384xf32>
    %c80 = arith.constant 80 : index
    %c0_65 = arith.constant 0 : index
    %62 = vector.load %arg4[%c80, %c0_65] : memref<196x384xf32, #tpu.memory_space<vmem>>, vector<4x384xf32>
    tpu.vector_store %arg4[%c80, %c0_65], %61 {strides = array<i32>} : memref<196x384xf32, #tpu.memory_space<vmem>>, vector<4x384xf32>,
    %c0_66 = arith.constant 0 : index
    %c0_67 = arith.constant 0 : index
    %c77 = arith.constant 77 : index
    %63 = vector.load %arg1[%c0_66, %c0_67, %c77] : memref<1x4x640xf32, #tpu.memory_space<vmem>>, vector<1x4x384xf32>
    %64 = vector.shape_cast %63 : vector<1x4x384xf32> to vector<4x384xf32>
    %c84 = arith.constant 84 : index
    %c0_68 = arith.constant 0 : index
    %65 = vector.load %arg4[%c84, %c0_68] : memref<196x384xf32, #tpu.memory_space<vmem>>, vector<4x384xf32>
    tpu.vector_store %arg4[%c84, %c0_68], %64 {strides = array<i32>} : memref<196x384xf32, #tpu.memory_space<vmem>>, vector<4x384xf32>,
    %c0_69 = arith.constant 0 : index
    %c0_70 = arith.constant 0 : index
    %c78 = arith.constant 78 : index
    %66 = vector.load %arg1[%c0_69, %c0_70, %c78] : memref<1x4x640xf32, #tpu.memory_space<vmem>>, vector<1x4x384xf32>
    %67 = vector.shape_cast %66 : vector<1x4x384xf32> to vector<4x384xf32>
    %c88 = arith.constant 88 : index
    %c0_71 = arith.constant 0 : index
    %68 = vector.load %arg4[%c88, %c0_71] : memref<196x384xf32, #tpu.memory_space<vmem>>, vector<4x384xf32>
    tpu.vector_store %arg4[%c88, %c0_71], %67 {strides = array<i32>} : memref<196x384xf32, #tpu.memory_space<vmem>>, vector<4x384xf32>,
    %c0_72 = arith.constant 0 : index
    %c0_73 = arith.constant 0 : index
    %c79 = arith.constant 79 : index
    %69 = vector.load %arg1[%c0_72, %c0_73, %c79] : memref<1x4x640xf32, #tpu.memory_space<vmem>>, vector<1x4x384xf32>
    %70 = vector.shape_cast %69 : vector<1x4x384xf32> to vector<4x384xf32>
    %c92 = arith.constant 92 : index
    %c0_74 = arith.constant 0 : index
    %71 = vector.load %arg4[%c92, %c0_74] : memref<196x384xf32, #tpu.memory_space<vmem>>, vector<4x384xf32>
    tpu.vector_store %arg4[%c92, %c0_74], %70 {strides = array<i32>} : memref<196x384xf32, #tpu.memory_space<vmem>>, vector<4x384xf32>,
    %c0_75 = arith.constant 0 : index
    %c0_76 = arith.constant 0 : index
    %c80_77 = arith.constant 80 : index
    %72 = vector.load %arg1[%c0_75, %c0_76, %c80_77] : memref<1x4x640xf32, #tpu.memory_space<vmem>>, vector<1x4x384xf32>
    %73 = vector.shape_cast %72 : vector<1x4x384xf32> to vector<4x384xf32>
    %c96 = arith.constant 96 : index
    %c0_78 = arith.constant 0 : index
    %74 = vector.load %arg4[%c96, %c0_78] : memref<196x384xf32, #tpu.memory_space<vmem>>, vector<4x384xf32>
    tpu.vector_store %arg4[%c96, %c0_78], %73 {strides = array<i32>} : memref<196x384xf32, #tpu.memory_space<vmem>>, vector<4x384xf32>,
    %c0_79 = arith.constant 0 : index
    %c0_80 = arith.constant 0 : index
    %c81 = arith.constant 81 : index
    %75 = vector.load %arg1[%c0_79, %c0_80, %c81] : memref<1x4x640xf32, #tpu.memory_space<vmem>>, vector<1x4x384xf32>
    %76 = vector.shape_cast %75 : vector<1x4x384xf32> to vector<4x384xf32>
    %c100 = arith.constant 100 : index
    %c0_81 = arith.constant 0 : index
    %77 = vector.load %arg4[%c100, %c0_81] : memref<196x384xf32, #tpu.memory_space<vmem>>, vector<4x384xf32>
    tpu.vector_store %arg4[%c100, %c0_81], %76 {strides = array<i32>} : memref<196x384xf32, #tpu.memory_space<vmem>>, vector<4x384xf32>,
    %c0_82 = arith.constant 0 : index
    %c0_83 = arith.constant 0 : index
    %c82 = arith.constant 82 : index
    %78 = vector.load %arg1[%c0_82, %c0_83, %c82] : memref<1x4x640xf32, #tpu.memory_space<vmem>>, vector<1x4x384xf32>
    %79 = vector.shape_cast %78 : vector<1x4x384xf32> to vector<4x384xf32>
    %c104 = arith.constant 104 : index
    %c0_84 = arith.constant 0 : index
    %80 = vector.load %arg4[%c104, %c0_84] : memref<196x384xf32, #tpu.memory_space<vmem>>, vector<4x384xf32>
    tpu.vector_store %arg4[%c104, %c0_84], %79 {strides = array<i32>} : memref<196x384xf32, #tpu.memory_space<vmem>>, vector<4x384xf32>,
    %c0_85 = arith.constant 0 : index
    %c0_86 = arith.constant 0 : index
    %c83 = arith.constant 83 : index
    %81 = vector.load %arg1[%c0_85, %c0_86, %c83] : memref<1x4x640xf32, #tpu.memory_space<vmem>>, vector<1x4x384xf32>
    %82 = vector.shape_cast %81 : vector<1x4x384xf32> to vector<4x384xf32>
    %c108 = arith.constant 108 : index
    %c0_87 = arith.constant 0 : index
    %83 = vector.load %arg4[%c108, %c0_87] : memref<196x384xf32, #tpu.memory_space<vmem>>, vector<4x384xf32>
    tpu.vector_store %arg4[%c108, %c0_87], %82 {strides = array<i32>} : memref<196x384xf32, #tpu.memory_space<vmem>>, vector<4x384xf32>,
    %c0_88 = arith.constant 0 : index
    %c0_89 = arith.constant 0 : index
    %c101 = arith.constant 101 : index
    %84 = vector.load %arg1[%c0_88, %c0_89, %c101] : memref<1x4x640xf32, #tpu.memory_space<vmem>>, vector<1x4x384xf32>
    %85 = vector.shape_cast %84 : vector<1x4x384xf32> to vector<4x384xf32>
    %c112 = arith.constant 112 : index
    %c0_90 = arith.constant 0 : index
    %86 = vector.load %arg4[%c112, %c0_90] : memref<196x384xf32, #tpu.memory_space<vmem>>, vector<4x384xf32>
    tpu.vector_store %arg4[%c112, %c0_90], %85 {strides = array<i32>} : memref<196x384xf32, #tpu.memory_space<vmem>>, vector<4x384xf32>,
    %c0_91 = arith.constant 0 : index
    %c0_92 = arith.constant 0 : index
    %c102 = arith.constant 102 : index
    %87 = vector.load %arg1[%c0_91, %c0_92, %c102] : memref<1x4x640xf32, #tpu.memory_space<vmem>>, vector<1x4x384xf32>
    %88 = vector.shape_cast %87 : vector<1x4x384xf32> to vector<4x384xf32>
    %c116 = arith.constant 116 : index
    %c0_93 = arith.constant 0 : index
    %89 = vector.load %arg4[%c116, %c0_93] : memref<196x384xf32, #tpu.memory_space<vmem>>, vector<4x384xf32>
    tpu.vector_store %arg4[%c116, %c0_93], %88 {strides = array<i32>} : memref<196x384xf32, #tpu.memory_space<vmem>>, vector<4x384xf32>,
    %c0_94 = arith.constant 0 : index
    %c0_95 = arith.constant 0 : index
    %c103 = arith.constant 103 : index
    %90 = vector.load %arg1[%c0_94, %c0_95, %c103] : memref<1x4x640xf32, #tpu.memory_space<vmem>>, vector<1x4x384xf32>
    %91 = vector.shape_cast %90 : vector<1x4x384xf32> to vector<4x384xf32>
    %c120 = arith.constant 120 : index
    %c0_96 = arith.constant 0 : index
    %92 = vector.load %arg4[%c120, %c0_96] : memref<196x384xf32, #tpu.memory_space<vmem>>, vector<4x384xf32>
    tpu.vector_store %arg4[%c120, %c0_96], %91 {strides = array<i32>} : memref<196x384xf32, #tpu.memory_space<vmem>>, vector<4x384xf32>,
    %c0_97 = arith.constant 0 : index
    %c0_98 = arith.constant 0 : index
    %c104_99 = arith.constant 104 : index
    %93 = vector.load %arg1[%c0_97, %c0_98, %c104_99] : memref<1x4x640xf32, #tpu.memory_space<vmem>>, vector<1x4x384xf32>
    %94 = vector.shape_cast %93 : vector<1x4x384xf32> to vector<4x384xf32>
    %c124 = arith.constant 124 : index
    %c0_100 = arith.constant 0 : index
    %95 = vector.load %arg4[%c124, %c0_100] : memref<196x384xf32, #tpu.memory_space<vmem>>, vector<4x384xf32>
    tpu.vector_store %arg4[%c124, %c0_100], %94 {strides = array<i32>} : memref<196x384xf32, #tpu.memory_space<vmem>>, vector<4x384xf32>,
    %c0_101 = arith.constant 0 : index
    %c0_102 = arith.constant 0 : index
    %c105 = arith.constant 105 : index
    %96 = vector.load %arg1[%c0_101, %c0_102, %c105] : memref<1x4x640xf32, #tpu.memory_space<vmem>>, vector<1x4x384xf32>
    %97 = vector.shape_cast %96 : vector<1x4x384xf32> to vector<4x384xf32>
    %c128 = arith.constant 128 : index
    %c0_103 = arith.constant 0 : index
    %98 = vector.load %arg4[%c128, %c0_103] : memref<196x384xf32, #tpu.memory_space<vmem>>, vector<4x384xf32>
    tpu.vector_store %arg4[%c128, %c0_103], %97 {strides = array<i32>} : memref<196x384xf32, #tpu.memory_space<vmem>>, vector<4x384xf32>,
    %c0_104 = arith.constant 0 : index
    %c0_105 = arith.constant 0 : index
    %c106 = arith.constant 106 : index
    %99 = vector.load %arg1[%c0_104, %c0_105, %c106] : memref<1x4x640xf32, #tpu.memory_space<vmem>>, vector<1x4x384xf32>
    %100 = vector.shape_cast %99 : vector<1x4x384xf32> to vector<4x384xf32>
    %c132 = arith.constant 132 : index
    %c0_106 = arith.constant 0 : index
    %101 = vector.load %arg4[%c132, %c0_106] : memref<196x384xf32, #tpu.memory_space<vmem>>, vector<4x384xf32>
    tpu.vector_store %arg4[%c132, %c0_106], %100 {strides = array<i32>} : memref<196x384xf32, #tpu.memory_space<vmem>>, vector<4x384xf32>,
    %c0_107 = arith.constant 0 : index
    %c0_108 = arith.constant 0 : index
    %c107 = arith.constant 107 : index
    %102 = vector.load %arg1[%c0_107, %c0_108, %c107] : memref<1x4x640xf32, #tpu.memory_space<vmem>>, vector<1x4x384xf32>
    %103 = vector.shape_cast %102 : vector<1x4x384xf32> to vector<4x384xf32>
    %c136 = arith.constant 136 : index
    %c0_109 = arith.constant 0 : index
    %104 = vector.load %arg4[%c136, %c0_109] : memref<196x384xf32, #tpu.memory_space<vmem>>, vector<4x384xf32>
    tpu.vector_store %arg4[%c136, %c0_109], %103 {strides = array<i32>} : memref<196x384xf32, #tpu.memory_space<vmem>>, vector<4x384xf32>,
    %c0_110 = arith.constant 0 : index
    %c0_111 = arith.constant 0 : index
    %c125 = arith.constant 125 : index
    %105 = vector.load %arg1[%c0_110, %c0_111, %c125] : memref<1x4x640xf32, #tpu.memory_space<vmem>>, vector<1x4x384xf32>
    %106 = vector.shape_cast %105 : vector<1x4x384xf32> to vector<4x384xf32>
    %c140 = arith.constant 140 : index
    %c0_112 = arith.constant 0 : index
    %107 = vector.load %arg4[%c140, %c0_112] : memref<196x384xf32, #tpu.memory_space<vmem>>, vector<4x384xf32>
    tpu.vector_store %arg4[%c140, %c0_112], %106 {strides = array<i32>} : memref<196x384xf32, #tpu.memory_space<vmem>>, vector<4x384xf32>,
    %c0_113 = arith.constant 0 : index
    %c0_114 = arith.constant 0 : index
    %c126 = arith.constant 126 : index
    %108 = vector.load %arg1[%c0_113, %c0_114, %c126] : memref<1x4x640xf32, #tpu.memory_space<vmem>>, vector<1x4x384xf32>
    %109 = vector.shape_cast %108 : vector<1x4x384xf32> to vector<4x384xf32>
    %c144 = arith.constant 144 : index
    %c0_115 = arith.constant 0 : index
    %110 = vector.load %arg4[%c144, %c0_115] : memref<196x384xf32, #tpu.memory_space<vmem>>, vector<4x384xf32>
    tpu.vector_store %arg4[%c144, %c0_115], %109 {strides = array<i32>} : memref<196x384xf32, #tpu.memory_space<vmem>>, vector<4x384xf32>,
    %c0_116 = arith.constant 0 : index
    %c0_117 = arith.constant 0 : index
    %c127 = arith.constant 127 : index
    %111 = vector.load %arg1[%c0_116, %c0_117, %c127] : memref<1x4x640xf32, #tpu.memory_space<vmem>>, vector<1x4x384xf32>
    %112 = vector.shape_cast %111 : vector<1x4x384xf32> to vector<4x384xf32>
    %c148 = arith.constant 148 : index
    %c0_118 = arith.constant 0 : index
    %113 = vector.load %arg4[%c148, %c0_118] : memref<196x384xf32, #tpu.memory_space<vmem>>, vector<4x384xf32>
    tpu.vector_store %arg4[%c148, %c0_118], %112 {strides = array<i32>} : memref<196x384xf32, #tpu.memory_space<vmem>>, vector<4x384xf32>,
    %c0_119 = arith.constant 0 : index
    %c0_120 = arith.constant 0 : index
    %c128_121 = arith.constant 128 : index
    %114 = vector.load %arg1[%c0_119, %c0_120, %c128_121] : memref<1x4x640xf32, #tpu.memory_space<vmem>>, vector<1x4x384xf32>
    %115 = vector.shape_cast %114 : vector<1x4x384xf32> to vector<4x384xf32>
    %c152 = arith.constant 152 : index
    %c0_122 = arith.constant 0 : index
    %116 = vector.load %arg4[%c152, %c0_122] : memref<196x384xf32, #tpu.memory_space<vmem>>, vector<4x384xf32>
    tpu.vector_store %arg4[%c152, %c0_122], %115 {strides = array<i32>} : memref<196x384xf32, #tpu.memory_space<vmem>>, vector<4x384xf32>,
    %c0_123 = arith.constant 0 : index
    %c0_124 = arith.constant 0 : index
    %c129 = arith.constant 129 : index
    %117 = vector.load %arg1[%c0_123, %c0_124, %c129] : memref<1x4x640xf32, #tpu.memory_space<vmem>>, vector<1x4x384xf32>
    %118 = vector.shape_cast %117 : vector<1x4x384xf32> to vector<4x384xf32>
    %c156 = arith.constant 156 : index
    %c0_125 = arith.constant 0 : index
    %119 = vector.load %arg4[%c156, %c0_125] : memref<196x384xf32, #tpu.memory_space<vmem>>, vector<4x384xf32>
    tpu.vector_store %arg4[%c156, %c0_125], %118 {strides = array<i32>} : memref<196x384xf32, #tpu.memory_space<vmem>>, vector<4x384xf32>,
    %c0_126 = arith.constant 0 : index
    %c0_127 = arith.constant 0 : index
    %c130 = arith.constant 130 : index
    %120 = vector.load %arg1[%c0_126, %c0_127, %c130] : memref<1x4x640xf32, #tpu.memory_space<vmem>>, vector<1x4x384xf32>
    %121 = vector.shape_cast %120 : vector<1x4x384xf32> to vector<4x384xf32>
    %c160 = arith.constant 160 : index
    %c0_128 = arith.constant 0 : index
    %122 = vector.load %arg4[%c160, %c0_128] : memref<196x384xf32, #tpu.memory_space<vmem>>, vector<4x384xf32>
    tpu.vector_store %arg4[%c160, %c0_128], %121 {strides = array<i32>} : memref<196x384xf32, #tpu.memory_space<vmem>>, vector<4x384xf32>,
    %c0_129 = arith.constant 0 : index
    %c0_130 = arith.constant 0 : index
    %c131 = arith.constant 131 : index
    %123 = vector.load %arg1[%c0_129, %c0_130, %c131] : memref<1x4x640xf32, #tpu.memory_space<vmem>>, vector<1x4x384xf32>
    %124 = vector.shape_cast %123 : vector<1x4x384xf32> to vector<4x384xf32>
    %c164 = arith.constant 164 : index
    %c0_131 = arith.constant 0 : index
    %125 = vector.load %arg4[%c164, %c0_131] : memref<196x384xf32, #tpu.memory_space<vmem>>, vector<4x384xf32>
    tpu.vector_store %arg4[%c164, %c0_131], %124 {strides = array<i32>} : memref<196x384xf32, #tpu.memory_space<vmem>>, vector<4x384xf32>,
    %c0_132 = arith.constant 0 : index
    %c0_133 = arith.constant 0 : index
    %c149 = arith.constant 149 : index
    %126 = vector.load %arg1[%c0_132, %c0_133, %c149] : memref<1x4x640xf32, #tpu.memory_space<vmem>>, vector<1x4x384xf32>
    %127 = vector.shape_cast %126 : vector<1x4x384xf32> to vector<4x384xf32>
    %c168 = arith.constant 168 : index
    %c0_134 = arith.constant 0 : index
    %128 = vector.load %arg4[%c168, %c0_134] : memref<196x384xf32, #tpu.memory_space<vmem>>, vector<4x384xf32>
    tpu.vector_store %arg4[%c168, %c0_134], %127 {strides = array<i32>} : memref<196x384xf32, #tpu.memory_space<vmem>>, vector<4x384xf32>,
    %c0_135 = arith.constant 0 : index
    %c0_136 = arith.constant 0 : index
    %c150 = arith.constant 150 : index
    %129 = vector.load %arg1[%c0_135, %c0_136, %c150] : memref<1x4x640xf32, #tpu.memory_space<vmem>>, vector<1x4x384xf32>
    %130 = vector.shape_cast %129 : vector<1x4x384xf32> to vector<4x384xf32>
    %c172 = arith.constant 172 : index
    %c0_137 = arith.constant 0 : index
    %131 = vector.load %arg4[%c172, %c0_137] : memref<196x384xf32, #tpu.memory_space<vmem>>, vector<4x384xf32>
    tpu.vector_store %arg4[%c172, %c0_137], %130 {strides = array<i32>} : memref<196x384xf32, #tpu.memory_space<vmem>>, vector<4x384xf32>,
    %c0_138 = arith.constant 0 : index
    %c0_139 = arith.constant 0 : index
    %c151 = arith.constant 151 : index
    %132 = vector.load %arg1[%c0_138, %c0_139, %c151] : memref<1x4x640xf32, #tpu.memory_space<vmem>>, vector<1x4x384xf32>
    %133 = vector.shape_cast %132 : vector<1x4x384xf32> to vector<4x384xf32>
    %c176 = arith.constant 176 : index
    %c0_140 = arith.constant 0 : index
    %134 = vector.load %arg4[%c176, %c0_140] : memref<196x384xf32, #tpu.memory_space<vmem>>, vector<4x384xf32>
    tpu.vector_store %arg4[%c176, %c0_140], %133 {strides = array<i32>} : memref<196x384xf32, #tpu.memory_space<vmem>>, vector<4x384xf32>,
    %c0_141 = arith.constant 0 : index
    %c0_142 = arith.constant 0 : index
    %c152_143 = arith.constant 152 : index
    %135 = vector.load %arg1[%c0_141, %c0_142, %c152_143] : memref<1x4x640xf32, #tpu.memory_space<vmem>>, vector<1x4x384xf32>
    %136 = vector.shape_cast %135 : vector<1x4x384xf32> to vector<4x384xf32>
    %c180 = arith.constant 180 : index
    %c0_144 = arith.constant 0 : index
    %137 = vector.load %arg4[%c180, %c0_144] : memref<196x384xf32, #tpu.memory_space<vmem>>, vector<4x384xf32>
    tpu.vector_store %arg4[%c180, %c0_144], %136 {strides = array<i32>} : memref<196x384xf32, #tpu.memory_space<vmem>>, vector<4x384xf32>,
    %c0_145 = arith.constant 0 : index
    %c0_146 = arith.constant 0 : index
    %c153 = arith.constant 153 : index
    %138 = vector.load %arg1[%c0_145, %c0_146, %c153] : memref<1x4x640xf32, #tpu.memory_space<vmem>>, vector<1x4x384xf32>
    %139 = vector.shape_cast %138 : vector<1x4x384xf32> to vector<4x384xf32>
    %c184 = arith.constant 184 : index
    %c0_147 = arith.constant 0 : index
    %140 = vector.load %arg4[%c184, %c0_147] : memref<196x384xf32, #tpu.memory_space<vmem>>, vector<4x384xf32>
    tpu.vector_store %arg4[%c184, %c0_147], %139 {strides = array<i32>} : memref<196x384xf32, #tpu.memory_space<vmem>>, vector<4x384xf32>,
    %c0_148 = arith.constant 0 : index
    %c0_149 = arith.constant 0 : index
    %c154 = arith.constant 154 : index
    %141 = vector.load %arg1[%c0_148, %c0_149, %c154] : memref<1x4x640xf32, #tpu.memory_space<vmem>>, vector<1x4x384xf32>
    %142 = vector.shape_cast %141 : vector<1x4x384xf32> to vector<4x384xf32>
    %c188 = arith.constant 188 : index
    %c0_150 = arith.constant 0 : index
    %143 = vector.load %arg4[%c188, %c0_150] : memref<196x384xf32, #tpu.memory_space<vmem>>, vector<4x384xf32>
    tpu.vector_store %arg4[%c188, %c0_150], %142 {strides = array<i32>} : memref<196x384xf32, #tpu.memory_space<vmem>>, vector<4x384xf32>,
    %c0_151 = arith.constant 0 : index
    %c0_152 = arith.constant 0 : index
    %c155 = arith.constant 155 : index
    %144 = vector.load %arg1[%c0_151, %c0_152, %c155] : memref<1x4x640xf32, #tpu.memory_space<vmem>>, vector<1x4x384xf32>
    %145 = vector.shape_cast %144 : vector<1x4x384xf32> to vector<4x384xf32>
    %c192 = arith.constant 192 : index
    %c0_153 = arith.constant 0 : index
    %146 = vector.load %arg4[%c192, %c0_153] : memref<196x384xf32, #tpu.memory_space<vmem>>, vector<4x384xf32>
    tpu.vector_store %arg4[%c192, %c0_153], %145 {strides = array<i32>} : memref<196x384xf32, #tpu.memory_space<vmem>>, vector<4x384xf32>,
    %c0_154 = arith.constant 0 : index
    %c0_155 = arith.constant 0 : index
    %147 = vector.load %arg2[%c0_154, %c0_155] : memref<4x196xf32, #tpu.memory_space<vmem>>, vector<4x196xf32>
    %c0_156 = arith.constant 0 : index
    %c0_157 = arith.constant 0 : index
    %148 = vector.load %arg4[%c0_156, %c0_157] : memref<196x384xf32, #tpu.memory_space<vmem>>, vector<196x384xf32>
    %cst = arith.constant dense<0.000000e+00> : vector<4x384xf32>
    %149 = tpu.matmul %147, %148, %cst {dimension_numbers = #tpu.dot_dimension_numbers<[1], [0], [0], [1], [0, 0, 1, 1], [], []>} : vector<4x196xf32>, vector<196x384xf32>, vector<4x384xf32> -> vector<4x384xf32>
    %c0_158 = arith.constant 0 : index
    %c0_159 = arith.constant 0 : index
    %c0_160 = arith.constant 0 : index
    %150 = vector.load %arg3[%c0_158, %c0_159, %c0_160] : memref<1x4x384xf32, #tpu.memory_space<vmem>>, vector<1x4x384xf32>
    %151 = vector.shape_cast %150 : vector<1x4x384xf32> to vector<4x384xf32>
    %152 = vector.shape_cast %149 : vector<4x384xf32> to vector<1x4x384xf32>
    tpu.vector_store %arg3[%c0_158, %c0_159, %c0_160], %152 {strides = array<i32>} : memref<1x4x384xf32, #tpu.memory_space<vmem>>, vector<1x4x384xf32>,
    return
  }
  func.func @transform_0(%arg0: i32) -> (i32, i32, i32) {
    %c0_i32 = arith.constant 0 : i32
    %c0_i32_0 = arith.constant 0 : i32
    %c0_i32_1 = arith.constant 0 : i32
    return %arg0, %c0_i32, %c0_i32_0 : i32, i32, i32
  }
  func.func @transform_1(%arg0: i32) -> (i32, i32) {
    %c0_i32 = arith.constant 0 : i32
    %c0_i32_0 = arith.constant 0 : i32
    %c0_i32_1 = arith.constant 0 : i32
    return %c0_i32, %c0_i32_0 : i32, i32
  }
  func.func @transform_2(%arg0: i32) -> (i32, i32, i32) {
    %c0_i32 = arith.constant 0 : i32
    %c0_i32_0 = arith.constant 0 : i32
    %c0_i32_1 = arith.constant 0 : i32
    return %arg0, %c0_i32, %c0_i32_0 : i32, i32, i32
  }
}

</mosaic_0001>

<llo_original>
// kernel: tpu_custom_call.1
$region0: #{tpu_custom_call.1}
  #allocation0 [shape = 'u32[]', space=smem, size = 0x4, offset = 0x4, fixed_abs, tag = 'smem constant byte address 0x4 - core index']
  #allocation1 [shape = 'u32[144,128]{1,0:T(1,128)}', space=vmem, size = 0x12000, scoped, tag = 'internal scratch']
  #allocation2 [shape = 'f32[196,384]{1,0:T(8,128)}', space=vmem, size = 0x4b000, scoped, tag = 'scratch operand']
  %s0 = inlined_call_operand.hbm [shape: f32[2,4,640], index: 0, kind: input, shape index: {}]
  %s1 = inlined_call_operand.hbm [shape: f32[4,196], index: 1, kind: input, shape index: {}]
  %s2 = inlined_call_operand.hbm [shape: f32[2,4,384], index: 2, kind: output, shape index: {}]
  %s3 = sld [smem:[#allocation0]]
  $region49: #{tpu_custom_call.1} parent=0
    _
  %s5 = ssub.s32 1, %s3
  %s6 = scalar_select 0, %s5, %s3
  $region1: #{tpu_custom_call.1} parent=0
    #allocation3 [shape = 'u8[20480]{0}', space=vmem, size = 0x5000, scoped, tag = 'input window, operand 0']
    #allocation4 [shape = 's32[2]{0}', space=sflag, size = 0x8, scoped, tag = 'scoped memory for tpu_custom_call.1']
    #allocation5 [shape = 's32[2]{0}', space=sflag, size = 0x8, scoped, tag = 'scoped memory for tpu_custom_call.1']
    #allocation6 [shape = 'u8[4096]{0}', space=vmem, size = 0x1000, scoped, tag = 'input window, operand 1, single buffered']
    #allocation7 [shape = 's32[1]{0}', space=sflag, size = 0x4, scoped, tag = 'scoped memory for tpu_custom_call.1']
    #allocation8 [shape = 'u8[12288]{0}', space=vmem, size = 0x3000, scoped, tag = 'output window, operand 0']
    %7 = vsyncpa [#allocation4], 0
    %s8 = scalar_lea.sflag [#allocation4], 1
    %9 = vsyncpa %s8, 0
    %10 = vsyncpa [#allocation7], 0
    %11 = vsyncpa [#allocation5], 0
    %s12 = scalar_lea.sflag [#allocation5], 1
    %13 = vsyncpa %s12, 0
    loop: start=0, step=1, limit=4
    $region2: #{tpu_custom_call.1} parent=1 // loop_pre_header
      _
    $region3: #{tpu_custom_call.1} parent=1 // loop_header
      %s15 = sphi 0, %s19
      %p16 = scmp.ge.s32.totalorder %s15, 4
      %s25 = sphi 0, %s27
      %s28 = sphi 0, %s25
      %s29 = sphi 0, %s28
      %s45 = sphi 0, %s29
      %s49 = sphi 0, %s49
      %s51 = sphi 0, %s49
      %s52 = sphi 0, %s51
      %s66 = sphi 0, %s52
      %s72 = sphi 0, %s74
      %s75 = sphi 0, %s72
      %s76 = sphi 0, %s75
      %s92 = sphi 0, %s76
    $region4: #{tpu_custom_call.1} parent=1 // loop_header_branch
      %18 = sbr.rel (%p16) target = $region8
    $region5: #{tpu_custom_call.1} parent=1 // loop_body
      %s20 = ssub.s32 %s15, 1
      %s21 = ssub.s32 %s15, 2
      %s22 = sadd.s32 %s15, 1
      %s23 = ssub.s32 %s15, %s22
      %p24 = scmp.eq.s32.totalorder %s23, 0
      %s26 = sadd.s32 %s25, 1
      %s27 = scalar_select %p24, %s25, %s26
      %p30 = pneg %p24
      %p31 = scmp.eq.s32.totalorder %s15, 1
      %p32 = por %p30, %p31
      %p33 = scmp.ne.s32.totalorder %s25, %s28
      %p34 = scmp.eq.s32.totalorder %s15, 0
      %p35 = por %p33, %p34
      %p36 = scmp.ne.s32.totalorder %s25, %s28
      %p37 = scmp.eq.s32.totalorder %s20, 1
      %p38 = por %p36, %p37
      %p39 = scmp.ne.s32.totalorder %s28, %s29
      %p40 = scmp.eq.s32.totalorder %s20, 0
      %p41 = por %p39, %p40
      %p42 = scmp.ne.s32.totalorder %s28, %s29
      %p43 = scmp.eq.s32.totalorder %s21, 1
      %p44 = por %p42, %p43
      %p46 = scmp.ne.s32.totalorder %s29, %s45
      %p47 = scmp.eq.s32.totalorder %s21, 0
      %p48 = por %p46, %p47
      %s50 = sadd.s32 %s49, 1
      %p53 = scmp.eq.s32.totalorder %s15, 1
      %p54 = scmp.ne.s32.totalorder %s49, %s51
      %p55 = scmp.eq.s32.totalorder %s15, 0
      %p56 = por %p54, %p55
      %p57 = scmp.ne.s32.totalorder %s49, %s51
      %p58 = scmp.eq.s32.totalorder %s20, 1
      %p59 = por %p57, %p58
      %p60 = scmp.ne.s32.totalorder %s51, %s52
      %p61 = scmp.eq.s32.totalorder %s20, 0
      %p62 = por %p60, %p61
      %p63 = scmp.ne.s32.totalorder %s51, %s52
      %p64 = scmp.eq.s32.totalorder %s21, 1
      %p65 = por %p63, %p64
      %p67 = scmp.ne.s32.totalorder %s52, %s66
      %p68 = scmp.eq.s32.totalorder %s21, 0
      %p69 = por %p67, %p68
      %s70 = ssub.s32 %s15, %s22
      %p71 = scmp.eq.s32.totalorder %s70, 0
      %s73 = sadd.s32 %s72, 1
      %s74 = scalar_select %p71, %s72, %s73
      %p77 = pneg %p71
      %p78 = scmp.eq.s32.totalorder %s15, 1
      %p79 = por %p77, %p78
      %p80 = scmp.ne.s32.totalorder %s72, %s75
      %p81 = scmp.eq.s32.totalorder %s15, 0
      %p82 = por %p80, %p81
      %p83 = scmp.ne.s32.totalorder %s72, %s75
      %p84 = scmp.eq.s32.totalorder %s20, 1
      %p85 = por %p83, %p84
      %p86 = scmp.ne.s32.totalorder %s75, %s76
      %p87 = scmp.eq.s32.totalorder %s20, 0
      %p88 = por %p86, %p87
      %p89 = scmp.ne.s32.totalorder %s75, %s76
      %p90 = scmp.eq.s32.totalorder %s21, 1
      %p91 = por %p89, %p90
      %p93 = scmp.ne.s32.totalorder %s76, %s92
      %p94 = scmp.eq.s32.totalorder %s21, 0
      %p95 = por %p93, %p94
      %p96 = scmp.le.s32.totalorder 1, %s15
      %p97 = scmp.lt.s32.totalorder %s15, 3
      %p98 = pnand %p96, %p97
      %p99 = pneg %p98
      // Predicated region
      $region9: #{tpu_custom_call.1} parent=5 // pred_check
        _
      $region10: #{tpu_custom_call.1} parent=5 // pred_check_branch
        %101 = sbr.rel (%p98) target = $region12
      $region11: #{tpu_custom_call.1} parent=5 // pred_region
        %s102 = ssub.s32 %s15, 1
        // Predicated region
        $region13: #{tpu_custom_call.1} parent=11 // pred_check
          %p103 = pneg %p62
        $region14: #{tpu_custom_call.1} parent=11 // pred_check_branch
          %105 = sbr.rel (%p103) target = $region16
        $region15: #{tpu_custom_call.1} parent=11 // pred_region
          %s107 = ssub.s32 128, 128
          %108 = vsyncadd [#allocation7], %s107
          %s110 = sshll.u32 [#allocation6], 4
          %s111 = int_to_ptr.vmem [resolvable:$true] %s110
          %113 = dma.hbm_to_vmem [thread:$0]  %s1, 128, %s111, [#allocation7]
        $region16: #{tpu_custom_call.1} parent=11 // pred_fallthru
          _
      $region12: #{tpu_custom_call.1} parent=5 // pred_fallthru
        _
      %p114 = scmp.lt.s32.totalorder %s15, 2
      // Predicated region
      $region17: #{tpu_custom_call.1} parent=5 // pred_check
        %p115 = pneg %p114
      $region18: #{tpu_custom_call.1} parent=5 // pred_check_branch
        %117 = sbr.rel (%p115) target = $region20
      $region19: #{tpu_custom_call.1} parent=5 // pred_region
        // Predicated region
        $region21: #{tpu_custom_call.1} parent=19 // pred_check
          %p118 = pneg %p35
        $region22: #{tpu_custom_call.1} parent=19 // pred_check_branch
          %120 = sbr.rel (%p118) target = $region24
        $region23: #{tpu_custom_call.1} parent=19 // pred_region
          %s121 = sand.u32 %s25, 1
          %s122 = scalar_lea.sflag [#allocation4], %s121
          %s123 = sand.u32 %s25, 1
          %s124 = smul.addr %s123, 20
          %s125 = scalar_lea.vmem [#allocation3], %s124
          %s127 = ssub.s32 320, 320
          %128 = vsyncadd %s122, %s127
          %s129 = smul.addr %s15, 5
          %s130 = smul.addr %s129, 64
          %s131 = scalar_lea.hbm %s0, %s130
          %s133 = sshll.u32 %s125, 4
          %s134 = int_to_ptr.vmem [resolvable:$true] %s133
          %136 = dma.hbm_to_vmem [thread:$0]  %s131, 320, %s134, %s122
        $region24: #{tpu_custom_call.1} parent=19 // pred_fallthru
          _
      $region20: #{tpu_custom_call.1} parent=5 // pred_fallthru
        _
      %p137 = scmp.le.s32.totalorder 1, %s15
      %p138 = scmp.lt.s32.totalorder %s15, 3
      %p139 = pnand %p137, %p138
      %p140 = pneg %p139
      // Predicated region
      $region25: #{tpu_custom_call.1} parent=5 // pred_check
        _
      $region26: #{tpu_custom_call.1} parent=5 // pred_check_branch
        %142 = sbr.rel (%p139) target = $region28
      $region27: #{tpu_custom_call.1} parent=5 // pred_region
        %s143 = ssub.s32 %s15, 1
        %s144 = sand.u32 %s28, 1
        %s145 = scalar_lea.sflag [#allocation4], %s144
        %s146 = sand.u32 %s28, 1
        %s147 = smul.addr %s146, 20
        %s148 = scalar_lea.vmem [#allocation3], %s147
        // Predicated region
        $region29: #{tpu_custom_call.1} parent=27 // pred_check
          %p149 = pneg %p41
        $region30: #{tpu_custom_call.1} parent=27 // pred_check_branch
          %151 = sbr.rel (%p149) target = $region32
        $region31: #{tpu_custom_call.1} parent=27 // pred_region
          %152 = dma.done %s145, 320
        $region32: #{tpu_custom_call.1} parent=27 // pred_fallthru
          _
        // Predicated region
        $region33: #{tpu_custom_call.1} parent=27 // pred_check
          %p153 = pneg %p62
        $region34: #{tpu_custom_call.1} parent=27 // pred_check_branch
          %155 = sbr.rel (%p153) target = $region36
        $region35: #{tpu_custom_call.1} parent=27 // pred_region
          %156 = dma.done [#allocation7], 128
        $region36: #{tpu_custom_call.1} parent=27 // pred_fallthru
          _
        %s157 = sand.u32 %s28, 1
        %s158 = scalar_lea.sflag [#allocation4], %s157
        %s159 = sand.u32 %s28, 1
        %s160 = smul.addr %s159, 20
        %s161 = scalar_lea.vmem [#allocation3], %s160
        %p162 = pneg %p41
        %p163 = pneg %p38
        %p164 = pneg %p62
        %p165 = pneg %p59
        %p166 = pneg %p88
        %p167 = pneg %p85
        %s168 = sand.u32 %s75, 1
        %s169 = scalar_lea.sflag [#allocation5], %s168
        %s170 = sand.u32 %s75, 1
        %s171 = smul.addr %s170, 12
        %s172 = scalar_lea.vmem [#allocation8], %s171
        %v173 = vld [vmem:[%s148] sm:$0xff]
        %v174 = vld [vmem:[%s148 + $0x8] sm:$0xff]
        %v177 = vcombine.high %v173, %v173
        %v178 = vcombine.high %v174, %v174
        %179 = vrot.lane.b32.xlu0 %v173, 123
        %v180 = vpop.permute.xlu0 %179
        %181 = vrot.lane.b32.xlu0 %v177, 123
        %v182 = vpop.permute.xlu0 %181
        %183 = vrot.lane.b32.xlu0 %v174, 123
        %v184 = vpop.permute.xlu0 %183
        %185 = vrot.lane.b32.xlu0 %v178, 123
        %v186 = vpop.permute.xlu0 %185
        %vm187 = vcmask 1006592
        %v188 = vsel %vm187, %v180, %v182
        %v189 = vsel %vm187, %v182, %v184
        %v190 = vsel %vm187, %v184, %v186
        %194 = vst [vmem:[#allocation2] sm:$0xf] %v188
        %195 = vst [vmem:[#allocation2 + $0x8] sm:$0xf] %v189
        %196 = vst [vmem:[#allocation2 + $0x10] sm:$0xf] %v190
        %v197 = vld [vmem:[%s148] sm:$0xff]
        %v198 = vld [vmem:[%s148 + $0x8] sm:$0xff]
        %v201 = vcombine.low %v197, %v197
        %v202 = vcombine.low %v198, %v198
        %203 = vrot.lane.b32.xlu0 %v201, 122
        %v204 = vpop.permute.xlu0 %203
        %205 = vrot.lane.b32.xlu0 %v197, 122
        %v206 = vpop.permute.xlu0 %205
        %207 = vrot.lane.b32.xlu0 %v202, 122
        %v208 = vpop.permute.xlu0 %207
        %209 = vrot.lane.b32.xlu0 %v198, 122
        %v210 = vpop.permute.xlu0 %209
        %vm211 = vcmask 998400
        %v212 = vsel %vm211, %v204, %v206
        %v213 = vsel %vm211, %v206, %v208
        %v214 = vsel %vm211, %v208, %v210
        %218 = vst [vmem:[#allocation2] sm:$0xf0] %v212
        %219 = vst [vmem:[#allocation2 + $0x8] sm:$0xf0] %v213
        %220 = vst [vmem:[#allocation2 + $0x10] sm:$0xf0] %v214
        %v221 = vld [vmem:[%s148] sm:$0xff]
        %v222 = vld [vmem:[%s148 + $0x8] sm:$0xff]
        %v225 = vcombine.high %v221, %v221
        %v226 = vcombine.high %v222, %v222
        %227 = vrot.lane.b32.xlu0 %v221, 121
        %v228 = vpop.permute.xlu0 %227
        %229 = vrot.lane.b32.xlu0 %v225, 121
        %v230 = vpop.permute.xlu0 %229
        %231 = vrot.lane.b32.xlu0 %v222, 121
        %v232 = vpop.permute.xlu0 %231
        %233 = vrot.lane.b32.xlu0 %v226, 121
        %v234 = vpop.permute.xlu0 %233
        %vm235 = vcmask 990208
        %v236 = vsel %vm235, %v228, %v230
        %v237 = vsel %vm235, %v230, %v232
        %v238 = vsel %vm235, %v232, %v234
        %242 = vst [vmem:[#allocation2 + $0x18] sm:$0xf] %v236
        %243 = vst [vmem:[#allocation2 + $0x20] sm:$0xf] %v237
        %244 = vst [vmem:[#allocation2 + $0x28] sm:$0xf] %v238
        %v245 = vld [vmem:[%s148] sm:$0xff]
        %v246 = vld [vmem:[%s148 + $0x8] sm:$0xff]
        %v249 = vcombine.low %v245, %v245
        %v250 = vcombine.low %v246, %v246
        %251 = vrot.lane.b32.xlu0 %v249, 120
        %v252 = vpop.permute.xlu0 %251
        %253 = vrot.lane.b32.xlu0 %v245, 120
        %v254 = vpop.permute.xlu0 %253
        %255 = vrot.lane.b32.xlu0 %v250, 120
        %v256 = vpop.permute.xlu0 %255
        %257 = vrot.lane.b32.xlu0 %v246, 120
        %v258 = vpop.permute.xlu0 %257
        %vm259 = vcmask 982016
        %v260 = vsel %vm259, %v252, %v254
        %v261 = vsel %vm259, %v254, %v256
        %v262 = vsel %vm259, %v256, %v258
        %266 = vst [vmem:[#allocation2 + $0x18] sm:$0xf0] %v260
        %267 = vst [vmem:[#allocation2 + $0x20] sm:$0xf0] %v261
        %268 = vst [vmem:[#allocation2 + $0x28] sm:$0xf0] %v262
        %v269 = vld [vmem:[%s148] sm:$0xff]
        %v270 = vld [vmem:[%s148 + $0x8] sm:$0xff]
        %v273 = vcombine.high %v269, %v269
        %v274 = vcombine.high %v270, %v270
        %275 = vrot.lane.b32.xlu0 %v269, 119
        %v276 = vpop.permute.xlu0 %275
        %277 = vrot.lane.b32.xlu0 %v273, 119
        %v278 = vpop.permute.xlu0 %277
        %279 = vrot.lane.b32.xlu0 %v270, 119
        %v280 = vpop.permute.xlu0 %279
        %281 = vrot.lane.b32.xlu0 %v274, 119
        %v282 = vpop.permute.xlu0 %281
        %vm283 = vcmask 973824
        %v284 = vsel %vm283, %v276, %v278
        %v285 = vsel %vm283, %v278, %v280
        %v286 = vsel %vm283, %v280, %v282
        %290 = vst [vmem:[#allocation2 + $0x30] sm:$0xf] %v284
        %291 = vst [vmem:[#allocation2 + $0x38] sm:$0xf] %v285
        %292 = vst [vmem:[#allocation2 + $0x40] sm:$0xf] %v286
        %v293 = vld [vmem:[%s148] sm:$0xff]
        %v294 = vld [vmem:[%s148 + $0x8] sm:$0xff]
        %v297 = vcombine.low %v293, %v293
        %v298 = vcombine.low %v294, %v294
        %299 = vrot.lane.b32.xlu0 %v297, 118
        %v300 = vpop.permute.xlu0 %299
        %301 = vrot.lane.b32.xlu0 %v293, 118
        %v302 = vpop.permute.xlu0 %301
        %303 = vrot.lane.b32.xlu0 %v298, 118
        %v304 = vpop.permute.xlu0 %303
        %305 = vrot.lane.b32.xlu0 %v294, 118
        %v306 = vpop.permute.xlu0 %305
        %vm307 = vcmask 965632
        %v308 = vsel %vm307, %v300, %v302
        %v309 = vsel %vm307, %v302, %v304
        %v310 = vsel %vm307, %v304, %v306
        %314 = vst [vmem:[#allocation2 + $0x30] sm:$0xf0] %v308
        %315 = vst [vmem:[#allocation2 + $0x38] sm:$0xf0] %v309
        %316 = vst [vmem:[#allocation2 + $0x40] sm:$0xf0] %v310
        %v317 = vld [vmem:[%s148] sm:$0xff]
        %v318 = vld [vmem:[%s148 + $0x8] sm:$0xff]
        %v321 = vcombine.high %v317, %v317
        %v322 = vcombine.high %v318, %v318
        %323 = vrot.lane.b32.xlu0 %v317, 117
        %v324 = vpop.permute.xlu0 %323
        %325 = vrot.lane.b32.xlu0 %v321, 117
        %v326 = vpop.permute.xlu0 %325
        %327 = vrot.lane.b32.xlu0 %v318, 117
        %v328 = vpop.permute.xlu0 %327
        %329 = vrot.lane.b32.xlu0 %v322, 117
        %v330 = vpop.permute.xlu0 %329
        %vm331 = vcmask 957440
        %v332 = vsel %vm331, %v324, %v326
        %v333 = vsel %vm331, %v326, %v328
        %v334 = vsel %vm331, %v328, %v330
        %338 = vst [vmem:[#allocation2 + $0x48] sm:$0xf] %v332
        %339 = vst [vmem:[#allocation2 + $0x50] sm:$0xf] %v333
        %340 = vst [vmem:[#allocation2 + $0x58] sm:$0xf] %v334
        %v341 = vld [vmem:[%s148] sm:$0xff]
        %v342 = vld [vmem:[%s148 + $0x8] sm:$0xff]
        %v345 = vcombine.low %v341, %v341
        %v346 = vcombine.low %v342, %v342
        %347 = vrot.lane.b32.xlu0 %v345, 99
        %v348 = vpop.permute.xlu0 %347
        %349 = vrot.lane.b32.xlu0 %v341, 99
        %v350 = vpop.permute.xlu0 %349
        %351 = vrot.lane.b32.xlu0 %v346, 99
        %v352 = vpop.permute.xlu0 %351
        %353 = vrot.lane.b32.xlu0 %v342, 99
        %v354 = vpop.permute.xlu0 %353
        %vm355 = vcmask 809984
        %v356 = vsel %vm355, %v348, %v350
        %v357 = vsel %vm355, %v350, %v352
        %v358 = vsel %vm355, %v352, %v354
        %362 = vst [vmem:[#allocation2 + $0x48] sm:$0xf0] %v356
        %363 = vst [vmem:[#allocation2 + $0x50] sm:$0xf0] %v357
        %364 = vst [vmem:[#allocation2 + $0x58] sm:$0xf0] %v358
        %v365 = vld [vmem:[%s148] sm:$0xff]
        %v366 = vld [vmem:[%s148 + $0x8] sm:$0xff]
        %v369 = vcombine.high %v365, %v365
        %v370 = vcombine.high %v366, %v366
        %371 = vrot.lane.b32.xlu0 %v365, 98
        %v372 = vpop.permute.xlu0 %371
        %373 = vrot.lane.b32.xlu0 %v369, 98
        %v374 = vpop.permute.xlu0 %373
        %375 = vrot.lane.b32.xlu0 %v366, 98
        %v376 = vpop.permute.xlu0 %375
        %377 = vrot.lane.b32.xlu0 %v370, 98
        %v378 = vpop.permute.xlu0 %377
        %vm379 = vcmask 801792
        %v380 = vsel %vm379, %v372, %v374
        %v381 = vsel %vm379, %v374, %v376
        %v382 = vsel %vm379, %v376, %v378
        %386 = vst [vmem:[#allocation2 + $0x60] sm:$0xf] %v380
        %387 = vst [vmem:[#allocation2 + $0x68] sm:$0xf] %v381
        %388 = vst [vmem:[#allocation2 + $0x70] sm:$0xf] %v382
        %v389 = vld [vmem:[%s148] sm:$0xff]
        %v390 = vld [vmem:[%s148 + $0x8] sm:$0xff]
        %v393 = vcombine.low %v389, %v389
        %v394 = vcombine.low %v390, %v390
        %395 = vrot.lane.b32.xlu0 %v393, 97
        %v396 = vpop.permute.xlu0 %395
        %397 = vrot.lane.b32.xlu0 %v389, 97
        %v398 = vpop.permute.xlu0 %397
        %399 = vrot.lane.b32.xlu0 %v394, 97
        %v400 = vpop.permute.xlu0 %399
        %401 = vrot.lane.b32.xlu0 %v390, 97
        %v402 = vpop.permute.xlu0 %401
        %vm403 = vcmask 793600
        %v404 = vsel %vm403, %v396, %v398
        %v405 = vsel %vm403, %v398, %v400
        %v406 = vsel %vm403, %v400, %v402
        %410 = vst [vmem:[#allocation2 + $0x60] sm:$0xf0] %v404
        %411 = vst [vmem:[#allocation2 + $0x68] sm:$0xf0] %v405
        %412 = vst [vmem:[#allocation2 + $0x70] sm:$0xf0] %v406
        %v413 = vld [vmem:[%s148] sm:$0xff]
        %v414 = vld [vmem:[%s148 + $0x8] sm:$0xff]
        %v417 = vcombine.high %v413, %v413
        %v418 = vcombine.high %v414, %v414
        %419 = vrot.lane.b32.xlu0 %v413, 96
        %v420 = vpop.permute.xlu0 %419
        %421 = vrot.lane.b32.xlu0 %v417, 96
        %v422 = vpop.permute.xlu0 %421
        %423 = vrot.lane.b32.xlu0 %v414, 96
        %v424 = vpop.permute.xlu0 %423
        %425 = vrot.lane.b32.xlu0 %v418, 96
        %v426 = vpop.permute.xlu0 %425
        %vm427 = vcmask 785408
        %v428 = vsel %vm427, %v420, %v422
        %v429 = vsel %vm427, %v422, %v424
        %v430 = vsel %vm427, %v424, %v426
        %434 = vst [vmem:[#allocation2 + $0x78] sm:$0xf] %v428
        %435 = vst [vmem:[#allocation2 + $0x80] sm:$0xf] %v429
        %436 = vst [vmem:[#allocation2 + $0x88] sm:$0xf] %v430
        %v437 = vld [vmem:[%s148] sm:$0xff]
        %v438 = vld [vmem:[%s148 + $0x8] sm:$0xff]
        %v441 = vcombine.low %v437, %v437
        %v442 = vcombine.low %v438, %v438
        %443 = vrot.lane.b32.xlu0 %v441, 95
        %v444 = vpop.permute.xlu0 %443
        %445 = vrot.lane.b32.xlu0 %v437, 95
        %v446 = vpop.permute.xlu0 %445
        %447 = vrot.lane.b32.xlu0 %v442, 95
        %v448 = vpop.permute.xlu0 %447
        %449 = vrot.lane.b32.xlu0 %v438, 95
        %v450 = vpop.permute.xlu0 %449
        %vm451 = vcmask 777216
        %v452 = vsel %vm451, %v444, %v446
        %v453 = vsel %vm451, %v446, %v448
        %v454 = vsel %vm451, %v448, %v450
        %458 = vst [vmem:[#allocation2 + $0x78] sm:$0xf0] %v452
        %459 = vst [vmem:[#allocation2 + $0x80] sm:$0xf0] %v453
        %460 = vst [vmem:[#allocation2 + $0x88] sm:$0xf0] %v454
        %v461 = vld [vmem:[%s148] sm:$0xff]
        %v462 = vld [vmem:[%s148 + $0x8] sm:$0xff]
        %v465 = vcombine.high %v461, %v461
        %v466 = vcombine.high %v462, %v462
        %467 = vrot.lane.b32.xlu0 %v461, 94
        %v468 = vpop.permute.xlu0 %467
        %469 = vrot.lane.b32.xlu0 %v465, 94
        %v470 = vpop.permute.xlu0 %469
        %471 = vrot.lane.b32.xlu0 %v462, 94
        %v472 = vpop.permute.xlu0 %471
        %473 = vrot.lane.b32.xlu0 %v466, 94
        %v474 = vpop.permute.xlu0 %473
        %vm475 = vcmask 769024
        %v476 = vsel %vm475, %v468, %v470
        %v477 = vsel %vm475, %v470, %v472
        %v478 = vsel %vm475, %v472, %v474
        %482 = vst [vmem:[#allocation2 + $0x90] sm:$0xf] %v476
        %483 = vst [vmem:[#allocation2 + $0x98] sm:$0xf] %v477
        %484 = vst [vmem:[#allocation2 + $0xa0] sm:$0xf] %v478
        %v485 = vld [vmem:[%s148] sm:$0xff]
        %v486 = vld [vmem:[%s148 + $0x8] sm:$0xff]
        %v489 = vcombine.low %v485, %v485
        %v490 = vcombine.low %v486, %v486
        %491 = vrot.lane.b32.xlu0 %v489, 93
        %v492 = vpop.permute.xlu0 %491
        %493 = vrot.lane.b32.xlu0 %v485, 93
        %v494 = vpop.permute.xlu0 %493
        %495 = vrot.lane.b32.xlu0 %v490, 93
        %v496 = vpop.permute.xlu0 %495
        %497 = vrot.lane.b32.xlu0 %v486, 93
        %v498 = vpop.permute.xlu0 %497
        %vm499 = vcmask 760832
        %v500 = vsel %vm499, %v492, %v494
        %v501 = vsel %vm499, %v494, %v496
        %v502 = vsel %vm499, %v496, %v498
        %506 = vst [vmem:[#allocation2 + $0x90] sm:$0xf0] %v500
        %507 = vst [vmem:[#allocation2 + $0x98] sm:$0xf0] %v501
        %508 = vst [vmem:[#allocation2 + $0xa0] sm:$0xf0] %v502
        %v509 = vld [vmem:[%s148] sm:$0xff]
        %v510 = vld [vmem:[%s148 + $0x8] sm:$0xff]
        %v513 = vcombine.high %v509, %v509
        %v514 = vcombine.high %v510, %v510
        %515 = vrot.lane.b32.xlu0 %v509, 75
        %v516 = vpop.permute.xlu0 %515
        %517 = vrot.lane.b32.xlu0 %v513, 75
        %v518 = vpop.permute.xlu0 %517
        %519 = vrot.lane.b32.xlu0 %v510, 75
        %v520 = vpop.permute.xlu0 %519
        %521 = vrot.lane.b32.xlu0 %v514, 75
        %v522 = vpop.permute.xlu0 %521
        %vm523 = vcmask 613376
        %v524 = vsel %vm523, %v516, %v518
        %v525 = vsel %vm523, %v518, %v520
        %v526 = vsel %vm523, %v520, %v522
        %530 = vst [vmem:[#allocation2 + $0xa8] sm:$0xf] %v524
        %531 = vst [vmem:[#allocation2 + $0xb0] sm:$0xf] %v525
        %532 = vst [vmem:[#allocation2 + $0xb8] sm:$0xf] %v526
        %v533 = vld [vmem:[%s148] sm:$0xff]
        %v534 = vld [vmem:[%s148 + $0x8] sm:$0xff]
        %v537 = vcombine.low %v533, %v533
        %v538 = vcombine.low %v534, %v534
        %539 = vrot.lane.b32.xlu0 %v537, 74
        %v540 = vpop.permute.xlu0 %539
        %541 = vrot.lane.b32.xlu0 %v533, 74
        %v542 = vpop.permute.xlu0 %541
        %543 = vrot.lane.b32.xlu0 %v538, 74
        %v544 = vpop.permute.xlu0 %543
        %545 = vrot.lane.b32.xlu0 %v534, 74
        %v546 = vpop.permute.xlu0 %545
        %vm547 = vcmask 605184
        %v548 = vsel %vm547, %v540, %v542
        %v549 = vsel %vm547, %v542, %v544
        %v550 = vsel %vm547, %v544, %v546
        %554 = vst [vmem:[#allocation2 + $0xa8] sm:$0xf0] %v548
        %555 = vst [vmem:[#allocation2 + $0xb0] sm:$0xf0] %v549
        %556 = vst [vmem:[#allocation2 + $0xb8] sm:$0xf0] %v550
        %v557 = vld [vmem:[%s148] sm:$0xff]
        %v558 = vld [vmem:[%s148 + $0x8] sm:$0xff]
        %v561 = vcombine.high %v557, %v557
        %v562 = vcombine.high %v558, %v558
        %563 = vrot.lane.b32.xlu0 %v557, 73
        %v564 = vpop.permute.xlu0 %563
        %565 = vrot.lane.b32.xlu0 %v561, 73
        %v566 = vpop.permute.xlu0 %565
        %567 = vrot.lane.b32.xlu0 %v558, 73
        %v568 = vpop.permute.xlu0 %567
        %569 = vrot.lane.b32.xlu0 %v562, 73
        %v570 = vpop.permute.xlu0 %569
        %vm571 = vcmask 596992
        %v572 = vsel %vm571, %v564, %v566
        %v573 = vsel %vm571, %v566, %v568
        %v574 = vsel %vm571, %v568, %v570
        %578 = vst [vmem:[#allocation2 + $0xc0] sm:$0xf] %v572
        %579 = vst [vmem:[#allocation2 + $0xc8] sm:$0xf] %v573
        %580 = vst [vmem:[#allocation2 + $0xd0] sm:$0xf] %v574
        %v581 = vld [vmem:[%s148] sm:$0xff]
        %v582 = vld [vmem:[%s148 + $0x8] sm:$0xff]
        %v585 = vcombine.low %v581, %v581
        %v586 = vcombine.low %v582, %v582
        %587 = vrot.lane.b32.xlu0 %v585, 72
        %v588 = vpop.permute.xlu0 %587
        %589 = vrot.lane.b32.xlu0 %v581, 72
        %v590 = vpop.permute.xlu0 %589
        %591 = vrot.lane.b32.xlu0 %v586, 72
        %v592 = vpop.permute.xlu0 %591
        %593 = vrot.lane.b32.xlu0 %v582, 72
        %v594 = vpop.permute.xlu0 %593
        %vm595 = vcmask 588800
        %v596 = vsel %vm595, %v588, %v590
        %v597 = vsel %vm595, %v590, %v592
        %v598 = vsel %vm595, %v592, %v594
        %602 = vst [vmem:[#allocation2 + $0xc0] sm:$0xf0] %v596
        %603 = vst [vmem:[#allocation2 + $0xc8] sm:$0xf0] %v597
        %604 = vst [vmem:[#allocation2 + $0xd0] sm:$0xf0] %v598
        %v605 = vld [vmem:[%s148] sm:$0xff]
        %v606 = vld [vmem:[%s148 + $0x8] sm:$0xff]
        %v609 = vcombine.high %v605, %v605
        %v610 = vcombine.high %v606, %v606
        %611 = vrot.lane.b32.xlu0 %v605, 71
        %v612 = vpop.permute.xlu0 %611
        %613 = vrot.lane.b32.xlu0 %v609, 71
        %v614 = vpop.permute.xlu0 %613
        %615 = vrot.lane.b32.xlu0 %v606, 71
        %v616 = vpop.permute.xlu0 %615
        %617 = vrot.lane.b32.xlu0 %v610, 71
        %v618 = vpop.permute.xlu0 %617
        %vm619 = vcmask 580608
        %v620 = vsel %vm619, %v612, %v614
        %v621 = vsel %vm619, %v614, %v616
        %v622 = vsel %vm619, %v616, %v618
        %626 = vst [vmem:[#allocation2 + $0xd8] sm:$0xf] %v620
        %627 = vst [vmem:[#allocation2 + $0xe0] sm:$0xf] %v621
        %628 = vst [vmem:[#allocation2 + $0xe8] sm:$0xf] %v622
        %v629 = vld [vmem:[%s148] sm:$0xff]
        %v630 = vld [vmem:[%s148 + $0x8] sm:$0xff]
        %v633 = vcombine.low %v629, %v629
        %v634 = vcombine.low %v630, %v630
        %635 = vrot.lane.b32.xlu0 %v633, 70
        %v636 = vpop.permute.xlu0 %635
        %637 = vrot.lane.b32.xlu0 %v629, 70
        %v638 = vpop.permute.xlu0 %637
        %639 = vrot.lane.b32.xlu0 %v634, 70
        %v640 = vpop.permute.xlu0 %639
        %641 = vrot.lane.b32.xlu0 %v630, 70
        %v642 = vpop.permute.xlu0 %641
        %vm643 = vcmask 572416
        %v644 = vsel %vm643, %v636, %v638
        %v645 = vsel %vm643, %v638, %v640
        %v646 = vsel %vm643, %v640, %v642
        %650 = vst [vmem:[#allocation2 + $0xd8] sm:$0xf0] %v644
        %651 = vst [vmem:[#allocation2 + $0xe0] sm:$0xf0] %v645
        %652 = vst [vmem:[#allocation2 + $0xe8] sm:$0xf0] %v646
        %v653 = vld [vmem:[%s148] sm:$0xff]
        %v654 = vld [vmem:[%s148 + $0x8] sm:$0xff]
        %v657 = vcombine.high %v653, %v653
        %v658 = vcombine.high %v654, %v654
        %659 = vrot.lane.b32.xlu0 %v653, 69
        %v660 = vpop.permute.xlu0 %659
        %661 = vrot.lane.b32.xlu0 %v657, 69
        %v662 = vpop.permute.xlu0 %661
        %663 = vrot.lane.b32.xlu0 %v654, 69
        %v664 = vpop.permute.xlu0 %663
        %665 = vrot.lane.b32.xlu0 %v658, 69
        %v666 = vpop.permute.xlu0 %665
        %vm667 = vcmask 564224
        %v668 = vsel %vm667, %v660, %v662
        %v669 = vsel %vm667, %v662, %v664
        %v670 = vsel %vm667, %v664, %v666
        %674 = vst [vmem:[#allocation2 + $0xf0] sm:$0xf] %v668
        %675 = vst [vmem:[#allocation2 + $0xf8] sm:$0xf] %v669
        %676 = vst [vmem:[#allocation2 + $0x100] sm:$0xf] %v670
        %v677 = vld [vmem:[%s148] sm:$0xff]
        %v678 = vld [vmem:[%s148 + $0x8] sm:$0xff]
        %v681 = vcombine.low %v677, %v677
        %v682 = vcombine.low %v678, %v678
        %683 = vrot.lane.b32.xlu0 %v681, 51
        %v684 = vpop.permute.xlu0 %683
        %685 = vrot.lane.b32.xlu0 %v677, 51
        %v686 = vpop.permute.xlu0 %685
        %687 = vrot.lane.b32.xlu0 %v682, 51
        %v688 = vpop.permute.xlu0 %687
        %689 = vrot.lane.b32.xlu0 %v678, 51
        %v690 = vpop.permute.xlu0 %689
        %vm691 = vcmask 416768
        %v692 = vsel %vm691, %v684, %v686
        %v693 = vsel %vm691, %v686, %v688
        %v694 = vsel %vm691, %v688, %v690
        %698 = vst [vmem:[#allocation2 + $0xf0] sm:$0xf0] %v692
        %699 = vst [vmem:[#allocation2 + $0xf8] sm:$0xf0] %v693
        %700 = vst [vmem:[#allocation2 + $0x100] sm:$0xf0] %v694
        %v701 = vld [vmem:[%s148] sm:$0xff]
        %v702 = vld [vmem:[%s148 + $0x8] sm:$0xff]
        %v705 = vcombine.high %v701, %v701
        %v706 = vcombine.high %v702, %v702
        %707 = vrot.lane.b32.xlu0 %v701, 50
        %v708 = vpop.permute.xlu0 %707
        %709 = vrot.lane.b32.xlu0 %v705, 50
        %v710 = vpop.permute.xlu0 %709
        %711 = vrot.lane.b32.xlu0 %v702, 50
        %v712 = vpop.permute.xlu0 %711
        %713 = vrot.lane.b32.xlu0 %v706, 50
        %v714 = vpop.permute.xlu0 %713
        %vm715 = vcmask 408576
        %v716 = vsel %vm715, %v708, %v710
        %v717 = vsel %vm715, %v710, %v712
        %v718 = vsel %vm715, %v712, %v714
        %722 = vst [vmem:[#allocation2 + $0x108] sm:$0xf] %v716
        %723 = vst [vmem:[#allocation2 + $0x110] sm:$0xf] %v717
        %724 = vst [vmem:[#allocation2 + $0x118] sm:$0xf] %v718
        %v725 = vld [vmem:[%s148] sm:$0xff]
        %v726 = vld [vmem:[%s148 + $0x8] sm:$0xff]
        %v729 = vcombine.low %v725, %v725
        %v730 = vcombine.low %v726, %v726
        %731 = vrot.lane.b32.xlu0 %v729, 49
        %v732 = vpop.permute.xlu0 %731
        %733 = vrot.lane.b32.xlu0 %v725, 49
        %v734 = vpop.permute.xlu0 %733
        %735 = vrot.lane.b32.xlu0 %v730, 49
        %v736 = vpop.permute.xlu0 %735
        %737 = vrot.lane.b32.xlu0 %v726, 49
        %v738 = vpop.permute.xlu0 %737
        %vm739 = vcmask 400384
        %v740 = vsel %vm739, %v732, %v734
        %v741 = vsel %vm739, %v734, %v736
        %v742 = vsel %vm739, %v736, %v738
        %746 = vst [vmem:[#allocation2 + $0x108] sm:$0xf0] %v740
        %747 = vst [vmem:[#allocation2 + $0x110] sm:$0xf0] %v741
        %748 = vst [vmem:[#allocation2 + $0x118] sm:$0xf0] %v742
        %v749 = vld [vmem:[%s148] sm:$0xff]
        %v750 = vld [vmem:[%s148 + $0x8] sm:$0xff]
        %v753 = vcombine.high %v749, %v749
        %v754 = vcombine.high %v750, %v750
        %755 = vrot.lane.b32.xlu0 %v749, 48
        %v756 = vpop.permute.xlu0 %755
        %757 = vrot.lane.b32.xlu0 %v753, 48
        %v758 = vpop.permute.xlu0 %757
        %759 = vrot.lane.b32.xlu0 %v750, 48
        %v760 = vpop.permute.xlu0 %759
        %761 = vrot.lane.b32.xlu0 %v754, 48
        %v762 = vpop.permute.xlu0 %761
        %vm763 = vcmask 392192
        %v764 = vsel %vm763, %v756, %v758
        %v765 = vsel %vm763, %v758, %v760
        %v766 = vsel %vm763, %v760, %v762
        %770 = vst [vmem:[#allocation2 + $0x120] sm:$0xf] %v764
        %771 = vst [vmem:[#allocation2 + $0x128] sm:$0xf] %v765
        %772 = vst [vmem:[#allocation2 + $0x130] sm:$0xf] %v766
        %v773 = vld [vmem:[%s148] sm:$0xff]
        %v774 = vld [vmem:[%s148 + $0x8] sm:$0xff]
        %v777 = vcombine.low %v773, %v773
        %v778 = vcombine.low %v774, %v774
        %779 = vrot.lane.b32.xlu0 %v777, 47
        %v780 = vpop.permute.xlu0 %779
        %781 = vrot.lane.b32.xlu0 %v773, 47
        %v782 = vpop.permute.xlu0 %781
        %783 = vrot.lane.b32.xlu0 %v778, 47
        %v784 = vpop.permute.xlu0 %783
        %785 = vrot.lane.b32.xlu0 %v774, 47
        %v786 = vpop.permute.xlu0 %785
        %vm787 = vcmask 384000
        %v788 = vsel %vm787, %v780, %v782
        %v789 = vsel %vm787, %v782, %v784
        %v790 = vsel %vm787, %v784, %v786
        %794 = vst [vmem:[#allocation2 + $0x120] sm:$0xf0] %v788
        %795 = vst [vmem:[#allocation2 + $0x128] sm:$0xf0] %v789
        %796 = vst [vmem:[#allocation2 + $0x130] sm:$0xf0] %v790
        %v797 = vld [vmem:[%s148] sm:$0xff]
        %v798 = vld [vmem:[%s148 + $0x8] sm:$0xff]
        %v801 = vcombine.high %v797, %v797
        %v802 = vcombine.high %v798, %v798
        %803 = vrot.lane.b32.xlu0 %v797, 46
        %v804 = vpop.permute.xlu0 %803
        %805 = vrot.lane.b32.xlu0 %v801, 46
        %v806 = vpop.permute.xlu0 %805
        %807 = vrot.lane.b32.xlu0 %v798, 46
        %v808 = vpop.permute.xlu0 %807
        %809 = vrot.lane.b32.xlu0 %v802, 46
        %v810 = vpop.permute.xlu0 %809
        %vm811 = vcmask 375808
        %v812 = vsel %vm811, %v804, %v806
        %v813 = vsel %vm811, %v806, %v808
        %v814 = vsel %vm811, %v808, %v810
        %818 = vst [vmem:[#allocation2 + $0x138] sm:$0xf] %v812
        %819 = vst [vmem:[#allocation2 + $0x140] sm:$0xf] %v813
        %820 = vst [vmem:[#allocation2 + $0x148] sm:$0xf] %v814
        %v821 = vld [vmem:[%s148] sm:$0xff]
        %v822 = vld [vmem:[%s148 + $0x8] sm:$0xff]
        %v825 = vcombine.low %v821, %v821
        %v826 = vcombine.low %v822, %v822
        %827 = vrot.lane.b32.xlu0 %v825, 45
        %v828 = vpop.permute.xlu0 %827
        %829 = vrot.lane.b32.xlu0 %v821, 45
        %v830 = vpop.permute.xlu0 %829
        %831 = vrot.lane.b32.xlu0 %v826, 45
        %v832 = vpop.permute.xlu0 %831
        %833 = vrot.lane.b32.xlu0 %v822, 45
        %v834 = vpop.permute.xlu0 %833
        %vm835 = vcmask 367616
        %v836 = vsel %vm835, %v828, %v830
        %v837 = vsel %vm835, %v830, %v832
        %v838 = vsel %vm835, %v832, %v834
        %842 = vst [vmem:[#allocation2 + $0x138] sm:$0xf0] %v836
        %843 = vst [vmem:[#allocation2 + $0x140] sm:$0xf0] %v837
        %844 = vst [vmem:[#allocation2 + $0x148] sm:$0xf0] %v838
        %v845 = vld [vmem:[%s148] sm:$0xff]
        %v846 = vld [vmem:[%s148 + $0x8] sm:$0xff]
        %v849 = vcombine.high %v845, %v845
        %v850 = vcombine.high %v846, %v846
        %851 = vrot.lane.b32.xlu0 %v845, 27
        %v852 = vpop.permute.xlu0 %851
        %853 = vrot.lane.b32.xlu0 %v849, 27
        %v854 = vpop.permute.xlu0 %853
        %855 = vrot.lane.b32.xlu0 %v846, 27
        %v856 = vpop.permute.xlu0 %855
        %857 = vrot.lane.b32.xlu0 %v850, 27
        %v858 = vpop.permute.xlu0 %857
        %vm859 = vcmask 220160
        %v860 = vsel %vm859, %v852, %v854
        %v861 = vsel %vm859, %v854, %v856
        %v862 = vsel %vm859, %v856, %v858
        %866 = vst [vmem:[#allocation2 + $0x150] sm:$0xf] %v860
        %867 = vst [vmem:[#allocation2 + $0x158] sm:$0xf] %v861
        %868 = vst [vmem:[#allocation2 + $0x160] sm:$0xf] %v862
        %v869 = vld [vmem:[%s148] sm:$0xff]
        %v870 = vld [vmem:[%s148 + $0x8] sm:$0xff]
        %v873 = vcombine.low %v869, %v869
        %v874 = vcombine.low %v870, %v870
        %875 = vrot.lane.b32.xlu0 %v873, 26
        %v876 = vpop.permute.xlu0 %875
        %877 = vrot.lane.b32.xlu0 %v869, 26
        %v878 = vpop.permute.xlu0 %877
        %879 = vrot.lane.b32.xlu0 %v874, 26
        %v880 = vpop.permute.xlu0 %879
        %881 = vrot.lane.b32.xlu0 %v870, 26
        %v882 = vpop.permute.xlu0 %881
        %vm883 = vcmask 211968
        %v884 = vsel %vm883, %v876, %v878
        %v885 = vsel %vm883, %v878, %v880
        %v886 = vsel %vm883, %v880, %v882
        %890 = vst [vmem:[#allocation2 + $0x150] sm:$0xf0] %v884
        %891 = vst [vmem:[#allocation2 + $0x158] sm:$0xf0] %v885
        %892 = vst [vmem:[#allocation2 + $0x160] sm:$0xf0] %v886
        %v893 = vld [vmem:[%s148] sm:$0xff]
        %v894 = vld [vmem:[%s148 + $0x8] sm:$0xff]
        %v897 = vcombine.high %v893, %v893
        %v898 = vcombine.high %v894, %v894
        %899 = vrot.lane.b32.xlu0 %v893, 25
        %v900 = vpop.permute.xlu0 %899
        %901 = vrot.lane.b32.xlu0 %v897, 25
        %v902 = vpop.permute.xlu0 %901
        %903 = vrot.lane.b32.xlu0 %v894, 25
        %v904 = vpop.permute.xlu0 %903
        %905 = vrot.lane.b32.xlu0 %v898, 25
        %v906 = vpop.permute.xlu0 %905
        %vm907 = vcmask 203776
        %v908 = vsel %vm907, %v900, %v902
        %v909 = vsel %vm907, %v902, %v904
        %v910 = vsel %vm907, %v904, %v906
        %914 = vst [vmem:[#allocation2 + $0x168] sm:$0xf] %v908
        %915 = vst [vmem:[#allocation2 + $0x170] sm:$0xf] %v909
        %916 = vst [vmem:[#allocation2 + $0x178] sm:$0xf] %v910
        %v917 = vld [vmem:[%s148] sm:$0xff]
        %v918 = vld [vmem:[%s148 + $0x8] sm:$0xff]
        %v921 = vcombine.low %v917, %v917
        %v922 = vcombine.low %v918, %v918
        %923 = vrot.lane.b32.xlu0 %v921, 24
        %v924 = vpop.permute.xlu0 %923
        %925 = vrot.lane.b32.xlu0 %v917, 24
        %v926 = vpop.permute.xlu0 %925
        %927 = vrot.lane.b32.xlu0 %v922, 24
        %v928 = vpop.permute.xlu0 %927
        %929 = vrot.lane.b32.xlu0 %v918, 24
        %v930 = vpop.permute.xlu0 %929
        %vm931 = vcmask 195584
        %v932 = vsel %vm931, %v924, %v926
        %v933 = vsel %vm931, %v926, %v928
        %v934 = vsel %vm931, %v928, %v930
        %938 = vst [vmem:[#allocation2 + $0x168] sm:$0xf0] %v932
        %939 = vst [vmem:[#allocation2 + $0x170] sm:$0xf0] %v933
        %940 = vst [vmem:[#allocation2 + $0x178] sm:$0xf0] %v934
        %v941 = vld [vmem:[%s148] sm:$0xff]
        %v942 = vld [vmem:[%s148 + $0x8] sm:$0xff]
        %v945 = vcombine.high %v941, %v941
        %v946 = vcombine.high %v942, %v942
        %947 = vrot.lane.b32.xlu0 %v941, 23
        %v948 = vpop.permute.xlu0 %947
        %949 = vrot.lane.b32.xlu0 %v945, 23
        %v950 = vpop.permute.xlu0 %949
        %951 = vrot.lane.b32.xlu0 %v942, 23
        %v952 = vpop.permute.xlu0 %951
        %953 = vrot.lane.b32.xlu0 %v946, 23
        %v954 = vpop.permute.xlu0 %953
        %vm955 = vcmask 187392
        %v956 = vsel %vm955, %v948, %v950
        %v957 = vsel %vm955, %v950, %v952
        %v958 = vsel %vm955, %v952, %v954
        %962 = vst [vmem:[#allocation2 + $0x180] sm:$0xf] %v956
        %963 = vst [vmem:[#allocation2 + $0x188] sm:$0xf] %v957
        %964 = vst [vmem:[#allocation2 + $0x190] sm:$0xf] %v958
        %v965 = vld [vmem:[%s148] sm:$0xff]
        %v966 = vld [vmem:[%s148 + $0x8] sm:$0xff]
        %v969 = vcombine.low %v965, %v965
        %v970 = vcombine.low %v966, %v966
        %971 = vrot.lane.b32.xlu0 %v969, 22
        %v972 = vpop.permute.xlu0 %971
        %973 = vrot.lane.b32.xlu0 %v965, 22
        %v974 = vpop.permute.xlu0 %973
        %975 = vrot.lane.b32.xlu0 %v970, 22
        %v976 = vpop.permute.xlu0 %975
        %977 = vrot.lane.b32.xlu0 %v966, 22
        %v978 = vpop.permute.xlu0 %977
        %vm979 = vcmask 179200
        %v980 = vsel %vm979, %v972, %v974
        %v981 = vsel %vm979, %v974, %v976
        %v982 = vsel %vm979, %v976, %v978
        %986 = vst [vmem:[#allocation2 + $0x180] sm:$0xf0] %v980
        %987 = vst [vmem:[#allocation2 + $0x188] sm:$0xf0] %v981
        %988 = vst [vmem:[#allocation2 + $0x190] sm:$0xf0] %v982
        %v989 = vld [vmem:[%s148] sm:$0xff]
        %v990 = vld [vmem:[%s148 + $0x8] sm:$0xff]
        %v993 = vcombine.high %v989, %v989
        %v994 = vcombine.high %v990, %v990
        %995 = vrot.lane.b32.xlu0 %v989, 21
        %v996 = vpop.permute.xlu0 %995
        %997 = vrot.lane.b32.xlu0 %v993, 21
        %v998 = vpop.permute.xlu0 %997
        %999 = vrot.lane.b32.xlu0 %v990, 21
        %v1000 = vpop.permute.xlu0 %999
        %1001 = vrot.lane.b32.xlu0 %v994, 21
        %v1002 = vpop.permute.xlu0 %1001
        %vm1003 = vcmask 171008
        %v1004 = vsel %vm1003, %v996, %v998
        %v1005 = vsel %vm1003, %v998, %v1000
        %v1006 = vsel %vm1003, %v1000, %v1002
        %1010 = vst [vmem:[#allocation2 + $0x198] sm:$0xf] %v1004
        %1011 = vst [vmem:[#allocation2 + $0x1a0] sm:$0xf] %v1005
        %1012 = vst [vmem:[#allocation2 + $0x1a8] sm:$0xf] %v1006
        %v1013 = vld [vmem:[%s148] sm:$0xff]
        %v1014 = vld [vmem:[%s148 + $0x8] sm:$0xff]
        %v1017 = vcombine.low %v1013, %v1013
        %v1018 = vcombine.low %v1014, %v1014
        %1019 = vrot.lane.b32.xlu0 %v1017, 3
        %v1020 = vpop.permute.xlu0 %1019
        %1021 = vrot.lane.b32.xlu0 %v1013, 3
        %v1022 = vpop.permute.xlu0 %1021
        %1023 = vrot.lane.b32.xlu0 %v1018, 3
        %v1024 = vpop.permute.xlu0 %1023
        %1025 = vrot.lane.b32.xlu0 %v1014, 3
        %v1026 = vpop.permute.xlu0 %1025
        %vm1027 = vcmask 23552
        %v1028 = vsel %vm1027, %v1020, %v1022
        %v1029 = vsel %vm1027, %v1022, %v1024
        %v1030 = vsel %vm1027, %v1024, %v1026
        %1034 = vst [vmem:[#allocation2 + $0x198] sm:$0xf0] %v1028
        %1035 = vst [vmem:[#allocation2 + $0x1a0] sm:$0xf0] %v1029
        %1036 = vst [vmem:[#allocation2 + $0x1a8] sm:$0xf0] %v1030
        %v1037 = vld [vmem:[%s148] sm:$0xff]
        %v1038 = vld [vmem:[%s148 + $0x8] sm:$0xff]
        %v1041 = vcombine.high %v1037, %v1037
        %v1042 = vcombine.high %v1038, %v1038
        %1043 = vrot.lane.b32.xlu0 %v1037, 2
        %v1044 = vpop.permute.xlu0 %1043
        %1045 = vrot.lane.b32.xlu0 %v1041, 2
        %v1046 = vpop.permute.xlu0 %1045
        %1047 = vrot.lane.b32.xlu0 %v1038, 2
        %v1048 = vpop.permute.xlu0 %1047
        %1049 = vrot.lane.b32.xlu0 %v1042, 2
        %v1050 = vpop.permute.xlu0 %1049
        %vm1051 = vcmask 15360
        %v1052 = vsel %vm1051, %v1044, %v1046
        %v1053 = vsel %vm1051, %v1046, %v1048
        %v1054 = vsel %vm1051, %v1048, %v1050
        %1058 = vst [vmem:[#allocation2 + $0x1b0] sm:$0xf] %v1052
        %1059 = vst [vmem:[#allocation2 + $0x1b8] sm:$0xf] %v1053
        %1060 = vst [vmem:[#allocation2 + $0x1c0] sm:$0xf] %v1054
        %v1061 = vld [vmem:[%s148] sm:$0xff]
        %v1062 = vld [vmem:[%s148 + $0x8] sm:$0xff]
        %v1065 = vcombine.low %v1061, %v1061
        %v1066 = vcombine.low %v1062, %v1062
        %1067 = vrot.lane.b32.xlu0 %v1065, 1
        %v1068 = vpop.permute.xlu0 %1067
        %1069 = vrot.lane.b32.xlu0 %v1061, 1
        %v1070 = vpop.permute.xlu0 %1069
        %1071 = vrot.lane.b32.xlu0 %v1066, 1
        %v1072 = vpop.permute.xlu0 %1071
        %1073 = vrot.lane.b32.xlu0 %v1062, 1
        %v1074 = vpop.permute.xlu0 %1073
        %vm1075 = vcmask 7168
        %v1076 = vsel %vm1075, %v1068, %v1070
        %v1077 = vsel %vm1075, %v1070, %v1072
        %v1078 = vsel %vm1075, %v1072, %v1074
        %1082 = vst [vmem:[#allocation2 + $0x1b0] sm:$0xf0] %v1076
        %1083 = vst [vmem:[#allocation2 + $0x1b8] sm:$0xf0] %v1077
        %1084 = vst [vmem:[#allocation2 + $0x1c0] sm:$0xf0] %v1078
        %v1085 = vld [vmem:[%s148 + $0x4] sm:$0xff]
        %v1086 = vld [vmem:[%s148 + $0xc] sm:$0xf]
        %v1088 = vcombine.high %v1085, %v1085
        %1090 = vst [vmem:[#allocation2 + $0x1c8] sm:$0xf] %v1085
        %1091 = vst [vmem:[#allocation2 + $0x1d0] sm:$0xf] %v1088
        %1092 = vst [vmem:[#allocation2 + $0x1d8] sm:$0xf] %v1086
        %v1093 = vld [vmem:[%s148 + $0x4] sm:$0xff]
        %v1094 = vld [vmem:[%s148 + $0xc] sm:$0xff]
        %v1097 = vcombine.low %v1093, %v1093
        %v1098 = vcombine.low %v1094, %v1094
        %1099 = vrot.lane.b32.xlu0 %v1097, 127
        %v1100 = vpop.permute.xlu0 %1099
        %1101 = vrot.lane.b32.xlu0 %v1093, 127
        %v1102 = vpop.permute.xlu0 %1101
        %1103 = vrot.lane.b32.xlu0 %v1098, 127
        %v1104 = vpop.permute.xlu0 %1103
        %1105 = vrot.lane.b32.xlu0 %v1094, 127
        %v1106 = vpop.permute.xlu0 %1105
        %vm1107 = vcmask 1039360
        %v1108 = vsel %vm1107, %v1100, %v1102
        %v1109 = vsel %vm1107, %v1102, %v1104
        %v1110 = vsel %vm1107, %v1104, %v1106
        %1114 = vst [vmem:[#allocation2 + $0x1c8] sm:$0xf0] %v1108
        %1115 = vst [vmem:[#allocation2 + $0x1d0] sm:$0xf0] %v1109
        %1116 = vst [vmem:[#allocation2 + $0x1d8] sm:$0xf0] %v1110
        %v1117 = vld [vmem:[%s148 + $0x4] sm:$0xff]
        %v1118 = vld [vmem:[%s148 + $0xc] sm:$0xff]
        %v1121 = vcombine.high %v1117, %v1117
        %v1122 = vcombine.high %v1118, %v1118
        %1123 = vrot.lane.b32.xlu0 %v1117, 126
        %v1124 = vpop.permute.xlu0 %1123
        %1125 = vrot.lane.b32.xlu0 %v1121, 126
        %v1126 = vpop.permute.xlu0 %1125
        %1127 = vrot.lane.b32.xlu0 %v1118, 126
        %v1128 = vpop.permute.xlu0 %1127
        %1129 = vrot.lane.b32.xlu0 %v1122, 126
        %v1130 = vpop.permute.xlu0 %1129
        %vm1131 = vcmask 1031168
        %v1132 = vsel %vm1131, %v1124, %v1126
        %v1133 = vsel %vm1131, %v1126, %v1128
        %v1134 = vsel %vm1131, %v1128, %v1130
        %1138 = vst [vmem:[#allocation2 + $0x1e0] sm:$0xf] %v1132
        %1139 = vst [vmem:[#allocation2 + $0x1e8] sm:$0xf] %v1133
        %1140 = vst [vmem:[#allocation2 + $0x1f0] sm:$0xf] %v1134
        %v1141 = vld [vmem:[%s148 + $0x4] sm:$0xff]
        %v1142 = vld [vmem:[%s148 + $0xc] sm:$0xff]
        %v1145 = vcombine.low %v1141, %v1141
        %v1146 = vcombine.low %v1142, %v1142
        %1147 = vrot.lane.b32.xlu0 %v1145, 125
        %v1148 = vpop.permute.xlu0 %1147
        %1149 = vrot.lane.b32.xlu0 %v1141, 125
        %v1150 = vpop.permute.xlu0 %1149
        %1151 = vrot.lane.b32.xlu0 %v1146, 125
        %v1152 = vpop.permute.xlu0 %1151
        %1153 = vrot.lane.b32.xlu0 %v1142, 125
        %v1154 = vpop.permute.xlu0 %1153
        %vm1155 = vcmask 1022976
        %v1156 = vsel %vm1155, %v1148, %v1150
        %v1157 = vsel %vm1155, %v1150, %v1152
        %v1158 = vsel %vm1155, %v1152, %v1154
        %1162 = vst [vmem:[#allocation2 + $0x1e0] sm:$0xf0] %v1156
        %1163 = vst [vmem:[#allocation2 + $0x1e8] sm:$0xf0] %v1157
        %1164 = vst [vmem:[#allocation2 + $0x1f0] sm:$0xf0] %v1158
        %v1165 = vld [vmem:[%s148 + $0x4] sm:$0xff]
        %v1166 = vld [vmem:[%s148 + $0xc] sm:$0xff]
        %v1169 = vcombine.high %v1165, %v1165
        %v1170 = vcombine.high %v1166, %v1166
        %1171 = vrot.lane.b32.xlu0 %v1165, 107
        %v1172 = vpop.permute.xlu0 %1171
        %1173 = vrot.lane.b32.xlu0 %v1169, 107
        %v1174 = vpop.permute.xlu0 %1173
        %1175 = vrot.lane.b32.xlu0 %v1166, 107
        %v1176 = vpop.permute.xlu0 %1175
        %1177 = vrot.lane.b32.xlu0 %v1170, 107
        %v1178 = vpop.permute.xlu0 %1177
        %vm1179 = vcmask 875520
        %v1180 = vsel %vm1179, %v1172, %v1174
        %v1181 = vsel %vm1179, %v1174, %v1176
        %v1182 = vsel %vm1179, %v1176, %v1178
        %1186 = vst [vmem:[#allocation2 + $0x1f8] sm:$0xf] %v1180
        %1187 = vst [vmem:[#allocation2 + $0x200] sm:$0xf] %v1181
        %1188 = vst [vmem:[#allocation2 + $0x208] sm:$0xf] %v1182
        %v1189 = vld [vmem:[%s148 + $0x4] sm:$0xff]
        %v1190 = vld [vmem:[%s148 + $0xc] sm:$0xff]
        %v1193 = vcombine.low %v1189, %v1189
        %v1194 = vcombine.low %v1190, %v1190
        %1195 = vrot.lane.b32.xlu0 %v1193, 106
        %v1196 = vpop.permute.xlu0 %1195
        %1197 = vrot.lane.b32.xlu0 %v1189, 106
        %v1198 = vpop.permute.xlu0 %1197
        %1199 = vrot.lane.b32.xlu0 %v1194, 106
        %v1200 = vpop.permute.xlu0 %1199
        %1201 = vrot.lane.b32.xlu0 %v1190, 106
        %v1202 = vpop.permute.xlu0 %1201
        %vm1203 = vcmask 867328
        %v1204 = vsel %vm1203, %v1196, %v1198
        %v1205 = vsel %vm1203, %v1198, %v1200
        %v1206 = vsel %vm1203, %v1200, %v1202
        %1210 = vst [vmem:[#allocation2 + $0x1f8] sm:$0xf0] %v1204
        %1211 = vst [vmem:[#allocation2 + $0x200] sm:$0xf0] %v1205
        %1212 = vst [vmem:[#allocation2 + $0x208] sm:$0xf0] %v1206
        %v1213 = vld [vmem:[%s148 + $0x4] sm:$0xff]
        %v1214 = vld [vmem:[%s148 + $0xc] sm:$0xff]
        %v1217 = vcombine.high %v1213, %v1213
        %v1218 = vcombine.high %v1214, %v1214
        %1219 = vrot.lane.b32.xlu0 %v1213, 105
        %v1220 = vpop.permute.xlu0 %1219
        %1221 = vrot.lane.b32.xlu0 %v1217, 105
        %v1222 = vpop.permute.xlu0 %1221
        %1223 = vrot.lane.b32.xlu0 %v1214, 105
        %v1224 = vpop.permute.xlu0 %1223
        %1225 = vrot.lane.b32.xlu0 %v1218, 105
        %v1226 = vpop.permute.xlu0 %1225
        %vm1227 = vcmask 859136
        %v1228 = vsel %vm1227, %v1220, %v1222
        %v1229 = vsel %vm1227, %v1222, %v1224
        %v1230 = vsel %vm1227, %v1224, %v1226
        %1234 = vst [vmem:[#allocation2 + $0x210] sm:$0xf] %v1228
        %1235 = vst [vmem:[#allocation2 + $0x218] sm:$0xf] %v1229
        %1236 = vst [vmem:[#allocation2 + $0x220] sm:$0xf] %v1230
        %v1237 = vld [vmem:[%s148 + $0x4] sm:$0xff]
        %v1238 = vld [vmem:[%s148 + $0xc] sm:$0xff]
        %v1241 = vcombine.low %v1237, %v1237
        %v1242 = vcombine.low %v1238, %v1238
        %1243 = vrot.lane.b32.xlu0 %v1241, 104
        %v1244 = vpop.permute.xlu0 %1243
        %1245 = vrot.lane.b32.xlu0 %v1237, 104
        %v1246 = vpop.permute.xlu0 %1245
        %1247 = vrot.lane.b32.xlu0 %v1242, 104
        %v1248 = vpop.permute.xlu0 %1247
        %1249 = vrot.lane.b32.xlu0 %v1238, 104
        %v1250 = vpop.permute.xlu0 %1249
        %vm1251 = vcmask 850944
        %v1252 = vsel %vm1251, %v1244, %v1246
        %v1253 = vsel %vm1251, %v1246, %v1248
        %v1254 = vsel %vm1251, %v1248, %v1250
        %1258 = vst [vmem:[#allocation2 + $0x210] sm:$0xf0] %v1252
        %1259 = vst [vmem:[#allocation2 + $0x218] sm:$0xf0] %v1253
        %1260 = vst [vmem:[#allocation2 + $0x220] sm:$0xf0] %v1254
        %v1261 = vld [vmem:[%s148 + $0x4] sm:$0xff]
        %v1262 = vld [vmem:[%s148 + $0xc] sm:$0xff]
        %v1265 = vcombine.high %v1261, %v1261
        %v1266 = vcombine.high %v1262, %v1262
        %1267 = vrot.lane.b32.xlu0 %v1261, 103
        %v1268 = vpop.permute.xlu0 %1267
        %1269 = vrot.lane.b32.xlu0 %v1265, 103
        %v1270 = vpop.permute.xlu0 %1269
        %1271 = vrot.lane.b32.xlu0 %v1262, 103
        %v1272 = vpop.permute.xlu0 %1271
        %1273 = vrot.lane.b32.xlu0 %v1266, 103
        %v1274 = vpop.permute.xlu0 %1273
        %vm1275 = vcmask 842752
        %v1276 = vsel %vm1275, %v1268, %v1270
        %v1277 = vsel %vm1275, %v1270, %v1272
        %v1278 = vsel %vm1275, %v1272, %v1274
        %1282 = vst [vmem:[#allocation2 + $0x228] sm:$0xf] %v1276
        %1283 = vst [vmem:[#allocation2 + $0x230] sm:$0xf] %v1277
        %1284 = vst [vmem:[#allocation2 + $0x238] sm:$0xf] %v1278
        %v1285 = vld [vmem:[%s148 + $0x4] sm:$0xff]
        %v1286 = vld [vmem:[%s148 + $0xc] sm:$0xff]
        %v1289 = vcombine.low %v1285, %v1285
        %v1290 = vcombine.low %v1286, %v1286
        %1291 = vrot.lane.b32.xlu0 %v1289, 102
        %v1292 = vpop.permute.xlu0 %1291
        %1293 = vrot.lane.b32.xlu0 %v1285, 102
        %v1294 = vpop.permute.xlu0 %1293
        %1295 = vrot.lane.b32.xlu0 %v1290, 102
        %v1296 = vpop.permute.xlu0 %1295
        %1297 = vrot.lane.b32.xlu0 %v1286, 102
        %v1298 = vpop.permute.xlu0 %1297
        %vm1299 = vcmask 834560
        %v1300 = vsel %vm1299, %v1292, %v1294
        %v1301 = vsel %vm1299, %v1294, %v1296
        %v1302 = vsel %vm1299, %v1296, %v1298
        %1306 = vst [vmem:[#allocation2 + $0x228] sm:$0xf0] %v1300
        %1307 = vst [vmem:[#allocation2 + $0x230] sm:$0xf0] %v1301
        %1308 = vst [vmem:[#allocation2 + $0x238] sm:$0xf0] %v1302
        %v1309 = vld [vmem:[%s148 + $0x4] sm:$0xff]
        %v1310 = vld [vmem:[%s148 + $0xc] sm:$0xff]
        %v1313 = vcombine.high %v1309, %v1309
        %v1314 = vcombine.high %v1310, %v1310
        %1315 = vrot.lane.b32.xlu0 %v1309, 101
        %v1316 = vpop.permute.xlu0 %1315
        %1317 = vrot.lane.b32.xlu0 %v1313, 101
        %v1318 = vpop.permute.xlu0 %1317
        %1319 = vrot.lane.b32.xlu0 %v1310, 101
        %v1320 = vpop.permute.xlu0 %1319
        %1321 = vrot.lane.b32.xlu0 %v1314, 101
        %v1322 = vpop.permute.xlu0 %1321
        %vm1323 = vcmask 826368
        %v1324 = vsel %vm1323, %v1316, %v1318
        %v1325 = vsel %vm1323, %v1318, %v1320
        %v1326 = vsel %vm1323, %v1320, %v1322
        %1330 = vst [vmem:[#allocation2 + $0x240] sm:$0xf] %v1324
        %1331 = vst [vmem:[#allocation2 + $0x248] sm:$0xf] %v1325
        %1332 = vst [vmem:[#allocation2 + $0x250] sm:$0xf] %v1326
        %v1333 = vld [vmem:[#allocation6] sm:$0xff]
        %v1334 = vld [vmem:[#allocation2] sm:$0xff]
        %v1335 = vld [vmem:[#allocation2 + $0x8] sm:$0xff]
        %v1336 = vld [vmem:[#allocation2 + $0x10] sm:$0xff]
        %v1337 = vld [vmem:[#allocation2 + $0x18] sm:$0xff]
        %v1338 = vld [vmem:[#allocation2 + $0x20] sm:$0xff]
        %v1339 = vld [vmem:[#allocation2 + $0x28] sm:$0xff]
        %v1340 = vld [vmem:[#allocation2 + $0x30] sm:$0xff]
        %v1341 = vld [vmem:[#allocation2 + $0x38] sm:$0xff]
        %v1342 = vld [vmem:[#allocation2 + $0x40] sm:$0xff]
        %v1343 = vld [vmem:[#allocation2 + $0x48] sm:$0xff]
        %v1344 = vld [vmem:[#allocation2 + $0x50] sm:$0xff]
        %v1345 = vld [vmem:[#allocation2 + $0x58] sm:$0xff]
        %v1346 = vld [vmem:[#allocation2 + $0x60] sm:$0xff]
        %v1347 = vld [vmem:[#allocation2 + $0x68] sm:$0xff]
        %v1348 = vld [vmem:[#allocation2 + $0x70] sm:$0xff]
        %v1349 = vld [vmem:[#allocation2 + $0x78] sm:$0xff]
        %v1350 = vld [vmem:[#allocation2 + $0x80] sm:$0xff]
        %v1351 = vld [vmem:[#allocation2 + $0x88] sm:$0xff]
        %v1352 = vld [vmem:[#allocation2 + $0x90] sm:$0xff]
        %v1353 = vld [vmem:[#allocation2 + $0x98] sm:$0xff]
        %v1354 = vld [vmem:[#allocation2 + $0xa0] sm:$0xff]
        %v1355 = vld [vmem:[#allocation2 + $0xa8] sm:$0xff]
        %v1356 = vld [vmem:[#allocation2 + $0xb0] sm:$0xff]
        %v1357 = vld [vmem:[#allocation2 + $0xb8] sm:$0xff]
        %v1358 = vld [vmem:[#allocation2 + $0xc0] sm:$0xff]
        %v1359 = vld [vmem:[#allocation2 + $0xc8] sm:$0xff]
        %v1360 = vld [vmem:[#allocation2 + $0xd0] sm:$0xff]
        %v1361 = vld [vmem:[#allocation2 + $0xd8] sm:$0xff]
        %v1362 = vld [vmem:[#allocation2 + $0xe0] sm:$0xff]
        %v1363 = vld [vmem:[#allocation2 + $0xe8] sm:$0xff]
        %v1364 = vld [vmem:[#allocation2 + $0xf0] sm:$0xff]
        %v1365 = vld [vmem:[#allocation2 + $0xf8] sm:$0xff]
        %v1366 = vld [vmem:[#allocation2 + $0x100] sm:$0xff]
        %v1367 = vld [vmem:[#allocation2 + $0x108] sm:$0xff]
        %v1368 = vld [vmem:[#allocation2 + $0x110] sm:$0xff]
        %v1369 = vld [vmem:[#allocation2 + $0x118] sm:$0xff]
        %v1370 = vld [vmem:[#allocation2 + $0x120] sm:$0xff]
        %v1371 = vld [vmem:[#allocation2 + $0x128] sm:$0xff]
        %v1372 = vld [vmem:[#allocation2 + $0x130] sm:$0xff]
        %v1373 = vld [vmem:[#allocation2 + $0x138] sm:$0xff]
        %v1374 = vld [vmem:[#allocation2 + $0x140] sm:$0xff]
        %v1375 = vld [vmem:[#allocation2 + $0x148] sm:$0xff]
        %v1376 = vld [vmem:[#allocation2 + $0x150] sm:$0xff]
        %v1377 = vld [vmem:[#allocation2 + $0x158] sm:$0xff]
        %v1378 = vld [vmem:[#allocation2 + $0x160] sm:$0xff]
        %v1379 = vld [vmem:[#allocation2 + $0x168] sm:$0xff]
        %v1380 = vld [vmem:[#allocation2 + $0x170] sm:$0xff]
        %v1381 = vld [vmem:[#allocation2 + $0x178] sm:$0xff]
        %v1382 = vld [vmem:[#allocation2 + $0x180] sm:$0xff]
        %v1383 = vld [vmem:[#allocation2 + $0x188] sm:$0xff]
        %v1384 = vld [vmem:[#allocation2 + $0x190] sm:$0xff]
        %v1385 = vld [vmem:[#allocation2 + $0x198] sm:$0xff]
        %v1386 = vld [vmem:[#allocation2 + $0x1a0] sm:$0xff]
        %v1387 = vld [vmem:[#allocation2 + $0x1a8] sm:$0xff]
        %v1388 = vld [vmem:[#allocation2 + $0x1b0] sm:$0xff]
        %v1389 = vld [vmem:[#allocation2 + $0x1b8] sm:$0xff]
        %v1390 = vld [vmem:[#allocation2 + $0x1c0] sm:$0xff]
        %v1391 = vld [vmem:[#allocation2 + $0x1c8] sm:$0xff]
        %v1392 = vld [vmem:[#allocation2 + $0x1d0] sm:$0xff]
        %v1393 = vld [vmem:[#allocation2 + $0x1d8] sm:$0xff]
        %v1394 = vld [vmem:[#allocation2 + $0x1e0] sm:$0xff]
        %v1395 = vld [vmem:[#allocation2 + $0x1e8] sm:$0xff]
        %v1396 = vld [vmem:[#allocation2 + $0x1f0] sm:$0xff]
        %v1397 = vld [vmem:[#allocation2 + $0x1f8] sm:$0xff]
        %v1398 = vld [vmem:[#allocation2 + $0x200] sm:$0xff]
        %v1399 = vld [vmem:[#allocation2 + $0x208] sm:$0xff]
        %v1400 = vld [vmem:[#allocation2 + $0x210] sm:$0xff]
        %v1401 = vld [vmem:[#allocation2 + $0x218] sm:$0xff]
        %v1402 = vld [vmem:[#allocation2 + $0x220] sm:$0xff]
        %v1403 = vld [vmem:[#allocation2 + $0x228] sm:$0xff]
        %v1404 = vld [vmem:[#allocation2 + $0x230] sm:$0xff]
        %v1405 = vld [vmem:[#allocation2 + $0x238] sm:$0xff]
        %v1406 = vld [vmem:[#allocation2 + $0x240] sm:$0xf]
        %v1407 = vld [vmem:[#allocation2 + $0x248] sm:$0xf]
        %v1408 = vld [vmem:[#allocation2 + $0x250] sm:$0xf]
        %v1410 = vcombine.high %v1333, %v1333
        %vm1411 = vcmask 556032
        %v1412 = vsel %vm1411, %v1410, 0
        %vm1414 = vcmask 1043456
        %v1416 = vsel %vm1414, %v1406, 0
        %v1419 = vsel %vm1414, %v1407, 0
        %v1422 = vsel %vm1414, %v1408, 0
        %1424 = vmatprep.subr.mxu0 %v1380
        %1425 = vmatpush1.msra.mxu0 %v1379
        %1426 = vmatprep.subr.mxu0 %v1377
        %1427 = vmatpush1.msra.mxu0 %v1376
        %1428 = vmatprep.subr.mxu0 %v1374
        %1429 = vmatpush1.msra.mxu0 %v1373
        %1430 = vmatprep.subr.mxu0 %v1371
        %1431 = vmatpush1.msra.mxu0 %v1370
        %1432 = vmatprep.subr.mxu0 %v1368
        %1433 = vmatpush1.msra.mxu0 %v1367
        %1434 = vmatprep.subr.mxu0 %v1365
        %1435 = vmatpush1.msra.mxu0 %v1364
        %1436 = vmatprep.subr.mxu0 %v1362
        %1437 = vmatpush1.msra.mxu0 %v1361
        %1438 = vmatprep.subr.mxu0 %v1359
        %1439 = vmatpush1.msra.mxu0 %v1358
        %1440 = vmatprep.subr.mxu0 %v1356
        %1441 = vmatpush1.msra.mxu0 %v1355
        %1442 = vmatprep.subr.mxu0 %v1353
        %1443 = vmatpush1.msra.mxu0 %v1352
        %1444 = vmatprep.subr.mxu0 %v1350
        %1445 = vmatpush1.msra.mxu0 %v1349
        %1446 = vmatprep.subr.mxu0 %v1347
        %1447 = vmatpush1.msra.mxu0 %v1346
        %1448 = vmatprep.subr.mxu0 %v1344
        %1449 = vmatpush1.msra.mxu0 %v1343
        %1450 = vmatprep.subr.mxu0 %v1341
        %1451 = vmatpush1.msra.mxu0 %v1340
        %1452 = vmatprep.subr.mxu0 %v1338
        %1453 = vmatpush1.msra.mxu0 %v1337
        %1454 = vmatprep.subr.mxu0 %v1335
        %1455 = vmatpush1.msra.mxu0 %v1334
        %1456 = vmatprep.subr.mxu0 0.0
        %1457 = vmatpush2.msra.mxu0 0.0
        %1458 = vmatprep.subr.mxu0 0.0
        %1459 = vmatpush2.msra.mxu0 0.0
        %1460 = vmatprep.subr.mxu0 0.0
        %1461 = vmatpush2.msra.mxu0 0.0
        %1462 = vmatprep.subr.mxu0 0.0
        %1463 = vmatpush2.msra.mxu0 0.0
        %1464 = vmatprep.subr.mxu0 0.0
        %1465 = vmatpush2.msra.mxu0 0.0
        %1466 = vmatprep.subr.mxu0 0.0
        %1467 = vmatpush2.msra.mxu0 0.0
        %1468 = vmatprep.subr.mxu0 0.0
        %1469 = vmatpush2.msra.mxu0 0.0
        %1470 = vmatprep.subr.mxu0 %v1419
        %1471 = vmatpush2.msra.mxu0 %v1416
        %1472 = vmatprep.subr.mxu0 %v1404
        %1473 = vmatpush2.msra.mxu0 %v1403
        %1474 = vmatprep.subr.mxu0 %v1401
        %1475 = vmatpush2.msra.mxu0 %v1400
        %1476 = vmatprep.subr.mxu0 %v1398
        %1477 = vmatpush2.msra.mxu0 %v1397
        %1478 = vmatprep.subr.mxu0 %v1395
        %1479 = vmatpush2.msra.mxu0 %v1394
        %1480 = vmatprep.subr.mxu0 %v1392
        %1481 = vmatpush2.msra.mxu0 %v1391
        %1482 = vmatprep.subr.mxu0 %v1389
        %1483 = vmatpush2.msra.mxu0 %v1388
        %1484 = vmatprep.subr.mxu0 %v1386
        %1485 = vmatpush2.msra.mxu0 %v1385
        %1486 = vmatprep.subr.mxu0 %v1383
        %1487 = vmatpush2.msra.mxu0 %v1382
        %1488 = vmatprep.mubr.f32.mxu0 %v1412
        %1489 = vmatmul.mubr.f32.gmra.mxu0 %v1333
        %v1490 = vpop.f32.mrf.mxu0
        %v1491 = vadd.f32 0.0, %v1490
        %v1492 = vpop.f32.mrf.mxu0
        %v1493 = vadd.f32 0.0, %v1492
        %1494 = vdwg.mxu0
        %1495 = vmatprep.subr.mxu0 0.0
        %1496 = vmatpush1.msra.mxu0 %v1381
        %1497 = vmatprep.subr.mxu0 0.0
        %1498 = vmatpush1.msra.mxu0 %v1378
        %1499 = vmatprep.subr.mxu0 0.0
        %1500 = vmatpush1.msra.mxu0 %v1375
        %1501 = vmatprep.subr.mxu0 0.0
        %1502 = vmatpush1.msra.mxu0 %v1372
        %1503 = vmatprep.subr.mxu0 0.0
        %1504 = vmatpush1.msra.mxu0 %v1369
        %1505 = vmatprep.subr.mxu0 0.0
        %1506 = vmatpush1.msra.mxu0 %v1366
        %1507 = vmatprep.subr.mxu0 0.0
        %1508 = vmatpush1.msra.mxu0 %v1363
        %1509 = vmatprep.subr.mxu0 0.0
        %1510 = vmatpush1.msra.mxu0 %v1360
        %1511 = vmatprep.subr.mxu0 0.0
        %1512 = vmatpush1.msra.mxu0 %v1357
        %1513 = vmatprep.subr.mxu0 0.0
        %1514 = vmatpush1.msra.mxu0 %v1354
        %1515 = vmatprep.subr.mxu0 0.0
        %1516 = vmatpush1.msra.mxu0 %v1351
        %1517 = vmatprep.subr.mxu0 0.0
        %1518 = vmatpush1.msra.mxu0 %v1348
        %1519 = vmatprep.subr.mxu0 0.0
        %1520 = vmatpush1.msra.mxu0 %v1345
        %1521 = vmatprep.subr.mxu0 0.0
        %1522 = vmatpush1.msra.mxu0 %v1342
        %1523 = vmatprep.subr.mxu0 0.0
        %1524 = vmatpush1.msra.mxu0 %v1339
        %1525 = vmatprep.subr.mxu0 0.0
        %1526 = vmatpush1.msra.mxu0 %v1336
        %1527 = vmatprep.subr.mxu0 0.0
        %1528 = vmatpush2.msra.mxu0 0.0
        %1529 = vmatprep.subr.mxu0 0.0
        %1530 = vmatpush2.msra.mxu0 0.0
        %1531 = vmatprep.subr.mxu0 0.0
        %1532 = vmatpush2.msra.mxu0 0.0
        %1533 = vmatprep.subr.mxu0 0.0
        %1534 = vmatpush2.msra.mxu0 0.0
        %1535 = vmatprep.subr.mxu0 0.0
        %1536 = vmatpush2.msra.mxu0 0.0
        %1537 = vmatprep.subr.mxu0 0.0
        %1538 = vmatpush2.msra.mxu0 0.0
        %1539 = vmatprep.subr.mxu0 0.0
        %1540 = vmatpush2.msra.mxu0 0.0
        %1541 = vmatprep.subr.mxu0 0.0
        %1542 = vmatpush2.msra.mxu0 %v1422
        %1543 = vmatprep.subr.mxu0 0.0
        %1544 = vmatpush2.msra.mxu0 %v1405
        %1545 = vmatprep.subr.mxu0 0.0
        %1546 = vmatpush2.msra.mxu0 %v1402
        %1547 = vmatprep.subr.mxu0 0.0
        %1548 = vmatpush2.msra.mxu0 %v1399
        %1549 = vmatprep.subr.mxu0 0.0
        %1550 = vmatpush2.msra.mxu0 %v1396
        %1551 = vmatprep.subr.mxu0 0.0
        %1552 = vmatpush2.msra.mxu0 %v1393
        %1553 = vmatprep.subr.mxu0 0.0
        %1554 = vmatpush2.msra.mxu0 %v1390
        %1555 = vmatprep.subr.mxu0 0.0
        %1556 = vmatpush2.msra.mxu0 %v1387
        %1557 = vmatprep.subr.mxu0 0.0
        %1558 = vmatpush2.msra.mxu0 %v1384
        %1559 = vmatprep.mubr.f32.mxu0 %v1412
        %1560 = vmatmul.mubr.f32.gmra.mxu0 %v1333
        %v1561 = vpop.f32.mrf.mxu0
        %v1562 = vadd.f32 0.0, %v1561
        %v1563 = vpop.f32.mrf.mxu0
        %1564 = vdwg.mxu0
        %v1567 = vcombine.low %v1491, %v1493
        %1569 = vst [vmem:[%s172] sm:$0xff] %v1567
        %1570 = vst [vmem:[%s172 + $0x8] sm:$0xf] %v1562
        %s1571 = sand.u32 %s75, 1
        %s1572 = scalar_lea.sflag [#allocation5], %s1571
        %s1573 = sand.u32 %s75, 1
        %s1574 = smul.addr %s1573, 12
        %s1575 = scalar_lea.vmem [#allocation8], %s1574
        // Predicated region
        $region37: #{tpu_custom_call.1} parent=27 // pred_check
          %p1576 = pneg %p85
        $region38: #{tpu_custom_call.1} parent=27 // pred_check_branch
          %1578 = sbr.rel (%p1576) target = $region40
        $region39: #{tpu_custom_call.1} parent=27 // pred_region
          %s1580 = ssub.s32 192, 192
          %1581 = vsyncadd %s1572, %s1580
          %s1582 = smul.addr %s20, 3
          %s1583 = smul.addr %s1582, 64
          %s1584 = scalar_lea.hbm %s2, %s1583
          %s1586 = sshll.u32 %s1575, 4
          %s1587 = int_to_ptr.vmem [resolvable:$true] %s1586
          %1589 = dma.vmem_to_hbm [thread:$0]  %s1587, 192, %s1584, %s1572
        $region40: #{tpu_custom_call.1} parent=27 // pred_fallthru
          _
      $region28: #{tpu_custom_call.1} parent=5 // pred_fallthru
        _
      %p1590 = scmp.le.s32.totalorder 2, %s15
      // Predicated region
      $region41: #{tpu_custom_call.1} parent=5 // pred_check
        %p1591 = pneg %p1590
      $region42: #{tpu_custom_call.1} parent=5 // pred_check_branch
        %1593 = sbr.rel (%p1591) target = $region44
      $region43: #{tpu_custom_call.1} parent=5 // pred_region
        %s1594 = ssub.s32 %s15, 2
        // Predicated region
        $region45: #{tpu_custom_call.1} parent=43 // pred_check
          %p1595 = pneg %p91
        $region46: #{tpu_custom_call.1} parent=43 // pred_check_branch
          %1597 = sbr.rel (%p1595) target = $region48
        $region47: #{tpu_custom_call.1} parent=43 // pred_region
          %s1598 = sand.u32 %s76, 1
          %s1599 = scalar_lea.sflag [#allocation5], %s1598
          %s1600 = sand.u32 %s76, 1
          %s1601 = smul.addr %s1600, 12
          %s1602 = scalar_lea.vmem [#allocation8], %s1601
          %1603 = dma.done %s1599, 192
        $region48: #{tpu_custom_call.1} parent=43 // pred_fallthru
          _
      $region44: #{tpu_custom_call.1} parent=5 // pred_fallthru
        _
    $region6: #{tpu_custom_call.1} parent=1 // loop_footer
      %s19 = sadd.s32 1, %s15
    $region7: #{tpu_custom_call.1} parent=1 // loop_footer_branch
      %14 = sbr.rel target = $region3
    $region8: #{tpu_custom_call.1} parent=1 // loop_exit
      _
    %1604 = vsyncpa [#allocation4], 1
    %s1605 = scalar_lea.sflag [#allocation4], 1
    %1606 = vsyncpa %s1605, 1
    %1607 = vsyncpa [#allocation7], 1
    %1608 = vsyncpa [#allocation5], 1
    %s1609 = scalar_lea.sflag [#allocation5], 1
    %1610 = vsyncpa %s1609, 1

</llo_original>
